<compile_context>
chip_gen: v5e
topology: v5e:2x2
jax: 0.10.0
libtpu: 0.0.40
codegen_flags: <defaults>
</compile_context>

<pallas_src>
import functools

import numpy as np
import jax
import jax.numpy as jnp
from jax.experimental import pallas as pl
from jax.experimental.pallas import tpu as pltpu

KERNEL_SIZES = (3, 4, 5)
KMAX = max(KERNEL_SIZES)
LANE = 128


def _round_up(x, m):
    return (x + m - 1) // m * m


# ----------------------------------------------------------------------------
# Fused kernel: DMA-gathered embedding -> 3x Conv1d + tanh + max-pool -> head
# (+ optional simlearning attention branch), one batch tile per grid step.
# ----------------------------------------------------------------------------
def _fused_cnn_kernel(*refs, TB, S, W, sim):
    if sim:
        (idx_ref, emb_ref, wf_ref, bc_ref, mask_ref, wh_ref, bh_ref,
         nvec_ref, wiki_ref, we_ref, be_ref, wa_ref, ba_ref, w2_ref,
         o_ref, x_buf, gsem) = refs
    else:
        (idx_ref, emb_ref, wf_ref, bc_ref, mask_ref, wh_ref, bh_ref,
         o_ref, x_buf, gsem) = refs

    f32, bf16 = jnp.float32, jnp.bfloat16
    BSt = TB * S
    base = pl.program_id(0) * BSt

    # ---- Embedding lookup: per-token DMA row gather; the table never enters
    #      VMEM (padding_idx=0 works because packed emb row 0 is zero).
    # TODO(synk): at production BS, chunk the gather (bounded outstanding DMAs)
    # and sort/dedup indices to coalesce repeated rows.
    @pl.loop(0, BSt)
    def _(t):
        row = idx_ref[base + t]
        pltpu.make_async_copy(emb_ref.at[pl.ds(row, 1)],
                              x_buf.at[pl.ds(t, 1)],
                              gsem.at[0]).start()

    @pl.loop(0, BSt)
    def _(t):
        # Equal-sized copies on one semaphore: N starts then N waits.
        pltpu.make_async_copy(emb_ref.at[pl.ds(0, 1)],
                              x_buf.at[pl.ds(t, 1)],
                              gsem.at[0]).wait()

    x = x_buf[...].astype(bf16)                       # single cast, (BSt, Ep)

    # ---- Fused 3-branch conv: KMAX aligned matmuls, partial results shifted
    #      with sublane rolls (no misaligned slices, no relayout copies).
    #      Wrapped rows only ever land on masked (invalid) positions.
    acc = jnp.dot(x, wf_ref[0], preferred_element_type=f32)      # (BSt, C3p)
    for j in range(1, KMAX):                          # static unroll (KMAX=5)
        yj = jnp.dot(x, wf_ref[j], preferred_element_type=f32)
        acc = acc + pltpu.roll(yj, shift=BSt - j, axis=0)
    acc = acc + bc_ref[...]

    # ---- tanh, precomputed tail mask (0 valid / -4 invalid), per-seq max.
    C3p = acc.shape[-1]
    t3 = jnp.tanh(acc).reshape(TB, S, C3p) + mask_ref[...][None]
    feats = jnp.max(t3, axis=1)                       # (TB, C3p)

    # ---- hidden2tag with lane-dense (128-padded) output columns.
    logits = jnp.dot(feats.astype(bf16), wh_ref[...],
                     preferred_element_type=f32) + bh_ref[...]   # (TB, P)

    if sim:
        # new = embedding(wiki*nvec); att = sigmoid(attention(new))
        # vec3 = layer2(new*att);     out = sigmoid(hidden2tag(feats) + vec3)
        nv = nvec_ref[...]                            # (TB, R) f32
        wk = wiki_ref[...]                            # (W, R)  f32
        prod = (nv[:, None, :] * wk[None, :, :]).reshape(TB * W, -1)
        new = jnp.dot(prod.astype(bf16), we_ref[...],
                      preferred_element_type=f32) + be_ref[...]  # (TB*W, Ep)
        att = jax.nn.sigmoid(
            jnp.dot(new.astype(bf16), wa_ref[...],
                    preferred_element_type=f32) + ba_ref[...])
        z3 = (new * att).reshape(TB, W, new.shape[-1])
        vec3 = jnp.sum(z3 * w2_ref[...][None], axis=-1)          # (TB, W)
        P_ = logits.shape[-1]
        if P_ > W:
            vec3 = jnp.concatenate(
                [vec3, jnp.zeros((TB, P_ - W), f32)], axis=1)
        o_ref[...] = jax.nn.sigmoid(logits + vec3)    # single lane-dense store
    else:
        o_ref[...] = jax.nn.sigmoid(logits)


# ----------------------------------------------------------------------------
# One-time weight packing (lane-dense padding + bf16 matmul operands).
# ----------------------------------------------------------------------------
def prepare_params(params):
    f32, bf16 = jnp.float32, jnp.bfloat16
    E, C = params["w1"].shape[1], params["w1"].shape[2]
    T = params["wh"].shape[1]
    R = params["we"].shape[0]
    V1 = params["emb"].shape[0]
    Ep, C3p, P = _round_up(E, LANE), _round_up(3 * C, LANE), _round_up(T, LANE)

    # Embedding table stays f32 and HBM-resident (row-gathered by DMA).
    emb = jnp.zeros((V1, Ep), f32).at[:, :E].set(params["emb"])

    wf = jnp.zeros((KMAX, Ep, C3p), f32)
    for seg, (w, k) in enumerate(
            zip((params["w1"], params["w2"], params["w3"]), KERNEL_SIZES)):
        wf = wf.at[:k, :E, seg * C:(seg + 1) * C].set(w)
    bc = jnp.zeros((1, C3p), f32).at[:, :3 * C].set(
        jnp.concatenate([params["b1"], params["b2"], params["b3"]], axis=1))

    wh = jnp.zeros((C3p, P), f32).at[:3 * C, :T].set(params["wh"])
    bh = jnp.zeros((1, P), f32).at[:, :T].set(params["bh"])

    we = jnp.zeros((R, Ep), f32).at[:, :E].set(params["we"])
    be = jnp.zeros((1, Ep), f32).at[:, :E].set(params["be"])
    wa = jnp.zeros((Ep, Ep), f32).at[:E, :E].set(params["wa"])
    ba = jnp.zeros((1, Ep), f32).at[:, :E].set(params["ba"])
    w2row = jnp.zeros((1, Ep), f32).at[:, :E].set(params["w2lin"].T)

    return {"emb": emb, "wf": wf.astype(bf16), "bc": bc,
            "wh": wh.astype(bf16), "bh": bh,
            "we": we.astype(bf16), "be": be,
            "wa": wa.astype(bf16), "ba": ba, "w2row": w2row}


def _pool_mask(S, C, C3p):
    """(S, C3p) additive mask: 0 where the conv window is valid, -4 (< any
    tanh value) where kernel-size k has no valid window at position s."""
    m = np.zeros((S, C3p), np.float32)
    for seg, k in enumerate(KERNEL_SIZES):
        m[np.arange(S) > S - k, seg * C:(seg + 1) * C] = -4.0
    return jnp.asarray(m)


# ----------------------------------------------------------------------------
# Wrapper: single pallas_call with a batch-parallel grid + scalar prefetch.
# ----------------------------------------------------------------------------
@functools.partial(jax.jit, static_argnames=("simlearning", "target_size",
                                             "conv_out", "batch_tile"))
def cnn_forward(prep, vec1, nvec, wiki, *, simlearning, target_size,
                conv_out, batch_tile=8):
    B, S = vec1.shape
    Ep = prep["emb"].shape[1]
    C3p = prep["wf"].shape[2]
    P = prep["wh"].shape[1]
    W = wiki.shape[0]
    TB = B if B < batch_tile else batch_tile

    assert S >= KMAX, "sequence shorter than the largest conv kernel"
    assert B % TB == 0, "pad the batch to a multiple of the batch tile"
    # TODO(synk): relax the S / W sublane-alignment requirements by padding.
    assert S % 8 == 0 and (TB == B or TB % 8 == 0)
    assert (not simlearning) or (W == target_size and W % 8 == 0 and W <= P)

    idx_flat = vec1.reshape(B * S).astype(jnp.int32)
    mask = _pool_mask(S, conv_out, C3p)

    def const(a):
        nd = a.ndim
        def imap(i, idx):
            return (0,) * nd
        return pl.BlockSpec(a.shape, imap)

    args = [prep["emb"], prep["wf"], prep["bc"], mask, prep["wh"], prep["bh"]]
    # TODO(synk): consider pl.Buffered(1) on the resident weight specs to
    # avoid pointless double-buffer VMEM once shapes get large.
    in_specs = [pl.BlockSpec(memory_space=pl.ANY),      # emb stays in HBM
                const(prep["wf"]), const(prep["bc"]), const(mask),
                const(prep["wh"]), const(prep["bh"])]
    if simlearning:
        nvec32 = nvec.astype(jnp.float32)
        wiki32 = wiki.astype(jnp.float32)
        args += [nvec32, wiki32, prep["we"], prep["be"], prep["wa"],
                 prep["ba"], prep["w2row"]]
        in_specs += [pl.BlockSpec((TB, nvec.shape[1]), lambda i, idx: (i, 0)),
                     const(wiki32), const(prep["we"]), const(prep["be"]),
                     const(prep["wa"]), const(prep["ba"]),
                     const(prep["w2row"])]

    kernel = functools.partial(_fused_cnn_kernel, TB=TB, S=S, W=W,
                               sim=simlearning)
    out_padded = pl.pallas_call(
        kernel,
        out_shape=jax.ShapeDtypeStruct((B, P), jnp.float32),
        grid_spec=pltpu.PrefetchScalarGridSpec(
            num_scalar_prefetch=1,
            grid=(B // TB,),
            in_specs=in_specs,
            out_specs=pl.BlockSpec((TB, P), lambda i, idx: (i, 0)),
            scratch_shapes=[pltpu.VMEM((TB * S, Ep), jnp.float32),
                            pltpu.SemaphoreType.DMA((1,))]),
        compiler_params=pltpu.CompilerParams(
            dimension_semantics=("parallel",),
            vmem_limit_bytes=32 * 1024 * 1024),
    )(idx_flat, *args)
    return out_padded[:, :target_size]


# ----------------------------------------------------------------------------
# Pure-JAX reference (mirrors the kernel's bf16 rounding points)
# ----------------------------------------------------------------------------
def reference_forward(params, vec1, nvec, wiki, simlearning):
    f32, bf16 = jnp.float32, jnp.bfloat16
    x = params["emb"][vec1].astype(bf16)              # (B, S, E)

    def conv(w, b):
        wb = w.astype(bf16)
        K = wb.shape[0]
        L = x.shape[1] - K + 1
        acc = jnp.zeros((x.shape[0], L, wb.shape[2]), f32)
        for j in range(K):
            acc += jnp.einsum("bse,ec->bsc", x[:, j:j + L, :], wb[j],
                              preferred_element_type=f32)
        return jnp.max(jnp.tanh(acc + b[None, :, :]), axis=1)   # (B, C)

    feats = jnp.concatenate([conv(params["w1"], params["b1"]),
                             conv(params["w2"], params["b2"]),
                             conv(params["w3"], params["b3"])], axis=1)
    logits = jnp.einsum("bf,ft->bt", feats.astype(bf16),
                        params["wh"].astype(bf16),
                        preferred_element_type=f32) + params["bh"]
    if not simlearning:
        return jax.nn.sigmoid(logits)
    prod = wiki[None, :, :].astype(f32) * nvec[:, None, :].astype(f32)
    new = jnp.einsum("bwr,re->bwe", prod.astype(bf16),
                     params["we"].astype(bf16),
                     preferred_element_type=f32) + params["be"][None]
    att = jax.nn.sigmoid(
        jnp.einsum("bwe,ef->bwf", new.astype(bf16),
                   params["wa"].astype(bf16),
                   preferred_element_type=f32) + params["ba"][None])
    vec3 = jnp.einsum("bwe,e->bw", new * att, params["w2lin"][:, 0])
    return jax.nn.sigmoid(logits + vec3)


# ----------------------------------------------------------------------------
if __name__ == "__main__":
    # Small shapes consistent with the module.  B=16 so the batch grid has two
    # sublane-aligned tiles of 8 and exercises the multi-step "parallel" grid.
    B, S = 16, 16             # batch, sequence length
    VOCAB = 50
    E = 32                    # embed_size
    C = 32                    # conv_out (demo; the original implies 100)
    T = 16                    # target_size (== number of wiki rows)
    R = 24                    # rvocsize
    W = T                     # wiki rows must equal target_size

    key = jax.random.PRNGKey(0)
    ks = jax.random.split(key, 16)

    def init(k, shape, scale=0.1):
        return (scale * jax.random.normal(k, shape)).astype(jnp.float32)

    emb = init(ks[0], (VOCAB + 1, E)).at[0].set(0.0)            # padding_idx=0
    params = {
        "emb": emb,
        # Conv1d weights stored as (K, in=E, out=C); biases as (1, C)
        "w1": init(ks[1], (KERNEL_SIZES[0], E, C)),
        "b1": init(ks[2], (1, C)),
        "w2": init(ks[3], (KERNEL_SIZES[1], E, C)),
        "b2": init(ks[4], (1, C)),
        "w3": init(ks[5], (KERNEL_SIZES[2], E, C)),
        "b3": init(ks[6], (1, C)),
        # hidden2tag: Linear(3*C, T)
        "wh": init(ks[7], (3 * C, T)),
        "bh": init(ks[8], (1, T)),
        # embedding: Linear(R, E)
        "we": init(ks[9], (R, E)),
        "be": init(ks[10], (1, E)),
        # attention: Linear(E, E)
        "wa": init(ks[11], (E, E)),
        "ba": init(ks[12], (1, E)),
        # layer2: Linear(E, 1, bias=False)
        "w2lin": init(ks[13], (E, 1)),
    }

    vec1 = jax.random.randint(ks[14], (B, S), 0, VOCAB + 1, dtype=jnp.int32)
    nvec = init(ks[15], (B, R), scale=1.0)
    wiki = init(jax.random.PRNGKey(1), (W, R), scale=1.0)

    prep = prepare_params(params)

    for sim in (False, True):
        out = jax.block_until_ready(
            cnn_forward(prep, vec1, nvec, wiki, simlearning=sim,
                        target_size=T, conv_out=C))
        ref = reference_forward(params, vec1, nvec, wiki, sim)
        assert out.shape == (B, T), out.shape
        err = float(jnp.max(jnp.abs(out - ref)))
        if not bool(jnp.allclose(out, ref, atol=5e-3)):
            raise AssertionError(
                f"mismatch (simlearning={sim}): max err {err}")

    print("KERNEL_OK")
</pallas_src>

<mosaic_0001>
module attributes {stable_mosaic.version = 11 : i64} {
  func.func @_fused_cnn_kernel(%arg0: i32, %arg1: memref<256xi32, #tpu.memory_space<smem>>, %arg2: memref<51x128xf32, #tpu.memory_space<any>>, %arg3: memref<5x128x128xbf16, #tpu.memory_space<vmem>>, %arg4: memref<1x128xf32, #tpu.memory_space<vmem>>, %arg5: memref<16x128xf32, #tpu.memory_space<vmem>>, %arg6: memref<128x128xbf16, #tpu.memory_space<vmem>>, %arg7: memref<1x128xf32, #tpu.memory_space<vmem>>, %arg8: memref<8x128xf32, #tpu.memory_space<vmem>>, %arg9: memref<128x128xf32, #tpu.memory_space<vmem>>, %arg10: memref<1x!tpu.dma_semaphore, #tpu.memory_space<semaphore_mem>>) attributes {dimension_semantics = [#tpu.dimension_semantics<parallel>], iteration_bounds = array<i64: 2>, scalar_prefetch = 1 : i64, scratch_operands = 2 : i64, tpu.core_type = #tpu.core_type<tc>, window_params = [{}, {pipeline_mode = #tpu.pipeline_mode<synchronous>, transform_indices = @transform_1, window_bounds = array<i64: 5, 128, 128>}, {pipeline_mode = #tpu.pipeline_mode<synchronous>, transform_indices = @transform_2, window_bounds = array<i64: 1, 128>}, {pipeline_mode = #tpu.pipeline_mode<synchronous>, transform_indices = @transform_3, window_bounds = array<i64: 16, 128>}, {pipeline_mode = #tpu.pipeline_mode<synchronous>, transform_indices = @transform_4, window_bounds = array<i64: 128, 128>}, {pipeline_mode = #tpu.pipeline_mode<synchronous>, transform_indices = @transform_5, window_bounds = array<i64: 1, 128>}, {transform_indices = @transform_6, window_bounds = array<i64: 8, 128>}]} {
    %c128_i32 = arith.constant 128 : i32
    %0 = arith.muli %arg0, %c128_i32 : i32
    %c0_i32 = arith.constant 0 : i32
    %c128_i32_0 = arith.constant 128 : i32
    %1 = arith.addi %c0_i32, %c128_i32_0 : i32
    %c1_i32 = arith.constant 1 : i32
    scf.for %arg11 = %c0_i32 to %1 step %c1_i32  : i32 {
      %c1_i32_35 = arith.constant 1 : i32
      %50 = arith.muli %arg11, %c1_i32_35 : i32
      %c0_i32_36 = arith.constant 0 : i32
      %51 = arith.addi %c0_i32_36, %50 : i32
      %52 = arith.addi %0, %51 : i32
      %53 = arith.index_cast %52 : i32 to index
      %54 = memref.load %arg1[%53] : memref<256xi32, #tpu.memory_space<smem>>
      %c0_i32_37 = arith.constant 0 : i32
      %c0_i32_38 = arith.constant 0 : i32
      %55 = tpu.memref_slice %arg2[%54, %c0_i32_38] : memref<51x128xf32, #tpu.memory_space<any>> -> memref<1x128xf32, #tpu.memory_space<any>>
      %c0_i32_39 = arith.constant 0 : i32
      %56 = tpu.memref_slice %arg9[%51, %c0_i32_39] : memref<128x128xf32, #tpu.memory_space<vmem>> -> memref<1x128xf32, #tpu.memory_space<vmem>>
      %57 = tpu.memref_slice %arg10[%c0_i32_37] : memref<1x!tpu.dma_semaphore, #tpu.memory_space<semaphore_mem>> -> memref<1x!tpu.dma_semaphore, #tpu.memory_space<semaphore_mem>>
      %58 = tpu.memref_squeeze %57 : memref<1x!tpu.dma_semaphore, #tpu.memory_space<semaphore_mem>> -> memref<!tpu.dma_semaphore, #tpu.memory_space<semaphore_mem>>
      tpu.enqueue_dma source(%55 : memref<1x128xf32, #tpu.memory_space<any>>) target(%56 : memref<1x128xf32, #tpu.memory_space<vmem>>) target_semaphore(%58 : memref<!tpu.dma_semaphore, #tpu.memory_space<semaphore_mem>>)
    }
    %c128_i32_1 = arith.constant 128 : i32
    %c0_i32_2 = arith.constant 0 : i32
    %c128_i32_3 = arith.constant 128 : i32
    %2 = arith.addi %c0_i32_2, %c128_i32_3 : i32
    %c1_i32_4 = arith.constant 1 : i32
    scf.for %arg11 = %c0_i32_2 to %2 step %c1_i32_4  : i32 {
      %c1_i32_35 = arith.constant 1 : i32
      %50 = arith.muli %arg11, %c1_i32_35 : i32
      %c0_i32_36 = arith.constant 0 : i32
      %51 = arith.addi %c0_i32_36, %50 : i32
      %c0_i32_37 = arith.constant 0 : i32
      %c0_i32_38 = arith.constant 0 : i32
      %c0_i32_39 = arith.constant 0 : i32
      %52 = tpu.memref_slice %arg2[%c0_i32_38, %c0_i32_39] : memref<51x128xf32, #tpu.memory_space<any>> -> memref<1x128xf32, #tpu.memory_space<any>>
      %c0_i32_40 = arith.constant 0 : i32
      %53 = tpu.memref_slice %arg9[%51, %c0_i32_40] : memref<128x128xf32, #tpu.memory_space<vmem>> -> memref<1x128xf32, #tpu.memory_space<vmem>>
      %54 = tpu.memref_slice %arg10[%c0_i32_37] : memref<1x!tpu.dma_semaphore, #tpu.memory_space<semaphore_mem>> -> memref<1x!tpu.dma_semaphore, #tpu.memory_space<semaphore_mem>>
      %55 = tpu.memref_squeeze %54 : memref<1x!tpu.dma_semaphore, #tpu.memory_space<semaphore_mem>> -> memref<!tpu.dma_semaphore, #tpu.memory_space<semaphore_mem>>
      tpu.wait_dma2 semaphore(%55 : memref<!tpu.dma_semaphore, #tpu.memory_space<semaphore_mem>>) src(%52 : memref<1x128xf32, #tpu.memory_space<any>>) dst(%53 : memref<1x128xf32, #tpu.memory_space<vmem>>)
    }
    %c128_i32_5 = arith.constant 128 : i32
    %c0 = arith.constant 0 : index
    %c0_6 = arith.constant 0 : index
    %3 = vector.load %arg9[%c0, %c0_6] : memref<128x128xf32, #tpu.memory_space<vmem>>, vector<128x128xf32>
    %4 = arith.truncf %3 : vector<128x128xf32> to vector<128x128xbf16>
    %c0_7 = arith.constant 0 : index
    %c0_8 = arith.constant 0 : index
    %c0_9 = arith.constant 0 : index
    %5 = vector.load %arg3[%c0_7, %c0_8, %c0_9] : memref<5x128x128xbf16, #tpu.memory_space<vmem>>, vector<1x128x128xbf16>
    %6 = vector.shape_cast %5 : vector<1x128x128xbf16> to vector<128x128xbf16>
    %cst = arith.constant dense<0.000000e+00> : vector<128x128xf32>
    %7 = tpu.matmul %4, %6, %cst {dimension_numbers = #tpu.dot_dimension_numbers<[1], [0], [0], [1], [0, 0, 1, 1], [], []>} : vector<128x128xbf16>, vector<128x128xbf16>, vector<128x128xf32> -> vector<128x128xf32>
    %c1 = arith.constant 1 : index
    %c0_10 = arith.constant 0 : index
    %c0_11 = arith.constant 0 : index
    %8 = vector.load %arg3[%c1, %c0_10, %c0_11] : memref<5x128x128xbf16, #tpu.memory_space<vmem>>, vector<1x128x128xbf16>
    %9 = vector.shape_cast %8 : vector<1x128x128xbf16> to vector<128x128xbf16>
    %cst_12 = arith.constant dense<0.000000e+00> : vector<128x128xf32>
    %10 = tpu.matmul %4, %9, %cst_12 {dimension_numbers = #tpu.dot_dimension_numbers<[1], [0], [0], [1], [0, 0, 1, 1], [], []>} : vector<128x128xbf16>, vector<128x128xbf16>, vector<128x128xf32> -> vector<128x128xf32>
    %c127_i32 = arith.constant 127 : i32
    %11 = tpu.dynamic_rotate %10 by %c127_i32 dim 0 : vector<128x128xf32>, i32 -> vector<128x128xf32>
    %12 = arith.addf %7, %11 : vector<128x128xf32>
    %c2 = arith.constant 2 : index
    %c0_13 = arith.constant 0 : index
    %c0_14 = arith.constant 0 : index
    %13 = vector.load %arg3[%c2, %c0_13, %c0_14] : memref<5x128x128xbf16, #tpu.memory_space<vmem>>, vector<1x128x128xbf16>
    %14 = vector.shape_cast %13 : vector<1x128x128xbf16> to vector<128x128xbf16>
    %cst_15 = arith.constant dense<0.000000e+00> : vector<128x128xf32>
    %15 = tpu.matmul %4, %14, %cst_15 {dimension_numbers = #tpu.dot_dimension_numbers<[1], [0], [0], [1], [0, 0, 1, 1], [], []>} : vector<128x128xbf16>, vector<128x128xbf16>, vector<128x128xf32> -> vector<128x128xf32>
    %c126_i32 = arith.constant 126 : i32
    %16 = tpu.dynamic_rotate %15 by %c126_i32 dim 0 : vector<128x128xf32>, i32 -> vector<128x128xf32>
    %17 = arith.addf %12, %16 : vector<128x128xf32>
    %c3 = arith.constant 3 : index
    %c0_16 = arith.constant 0 : index
    %c0_17 = arith.constant 0 : index
    %18 = vector.load %arg3[%c3, %c0_16, %c0_17] : memref<5x128x128xbf16, #tpu.memory_space<vmem>>, vector<1x128x128xbf16>
    %19 = vector.shape_cast %18 : vector<1x128x128xbf16> to vector<128x128xbf16>
    %cst_18 = arith.constant dense<0.000000e+00> : vector<128x128xf32>
    %20 = tpu.matmul %4, %19, %cst_18 {dimension_numbers = #tpu.dot_dimension_numbers<[1], [0], [0], [1], [0, 0, 1, 1], [], []>} : vector<128x128xbf16>, vector<128x128xbf16>, vector<128x128xf32> -> vector<128x128xf32>
    %c125_i32 = arith.constant 125 : i32
    %21 = tpu.dynamic_rotate %20 by %c125_i32 dim 0 : vector<128x128xf32>, i32 -> vector<128x128xf32>
    %22 = arith.addf %17, %21 : vector<128x128xf32>
    %c4 = arith.constant 4 : index
    %c0_19 = arith.constant 0 : index
    %c0_20 = arith.constant 0 : index
    %23 = vector.load %arg3[%c4, %c0_19, %c0_20] : memref<5x128x128xbf16, #tpu.memory_space<vmem>>, vector<1x128x128xbf16>
    %24 = vector.shape_cast %23 : vector<1x128x128xbf16> to vector<128x128xbf16>
    %cst_21 = arith.constant dense<0.000000e+00> : vector<128x128xf32>
    %25 = tpu.matmul %4, %24, %cst_21 {dimension_numbers = #tpu.dot_dimension_numbers<[1], [0], [0], [1], [0, 0, 1, 1], [], []>} : vector<128x128xbf16>, vector<128x128xbf16>, vector<128x128xf32> -> vector<128x128xf32>
    %c124_i32 = arith.constant 124 : i32
    %26 = tpu.dynamic_rotate %25 by %c124_i32 dim 0 : vector<128x128xf32>, i32 -> vector<128x128xf32>
    %27 = arith.addf %22, %26 : vector<128x128xf32>
    %c0_22 = arith.constant 0 : index
    %c0_23 = arith.constant 0 : index
    %28 = vector.load %arg4[%c0_22, %c0_23] : memref<1x128xf32, #tpu.memory_space<vmem>>, vector<1x128xf32>
    %29 = vector.broadcast %28 : vector<1x128xf32> to vector<128x128xf32>
    %30 = arith.addf %27, %29 : vector<128x128xf32>
    %31 = math.tanh %30 : vector<128x128xf32>
    %32 = vector.shape_cast %31 : vector<128x128xf32> to vector<8x16x128xf32>
    %c0_24 = arith.constant 0 : index
    %c0_25 = arith.constant 0 : index
    %33 = vector.load %arg5[%c0_24, %c0_25] : memref<16x128xf32, #tpu.memory_space<vmem>>, vector<16x128xf32>
    %34 = vector.shape_cast %33 : vector<16x128xf32> to vector<1x16x128xf32>
    %35 = vector.broadcast %34 : vector<1x16x128xf32> to vector<8x16x128xf32>
    %36 = arith.addf %32, %35 : vector<8x16x128xf32>
    %cst_26 = arith.constant dense<0xFF800000> : vector<8x128xf32>
    %37 = vector.multi_reduction <maximumf>, %36, %cst_26 [1] : vector<8x16x128xf32> to vector<8x128xf32>
    %38 = arith.truncf %37 : vector<8x128xf32> to vector<8x128xbf16>
    %c0_27 = arith.constant 0 : index
    %c0_28 = arith.constant 0 : index
    %39 = vector.load %arg6[%c0_27, %c0_28] : memref<128x128xbf16, #tpu.memory_space<vmem>>, vector<128x128xbf16>
    %cst_29 = arith.constant dense<0.000000e+00> : vector<8x128xf32>
    %40 = tpu.matmul %38, %39, %cst_29 {dimension_numbers = #tpu.dot_dimension_numbers<[1], [0], [0], [1], [0, 0, 1, 1], [], []>} : vector<8x128xbf16>, vector<128x128xbf16>, vector<8x128xf32> -> vector<8x128xf32>
    %c0_30 = arith.constant 0 : index
    %c0_31 = arith.constant 0 : index
    %41 = vector.load %arg7[%c0_30, %c0_31] : memref<1x128xf32, #tpu.memory_space<vmem>>, vector<1x128xf32>
    %42 = vector.broadcast %41 : vector<1x128xf32> to vector<8x128xf32>
    %43 = arith.addf %40, %42 : vector<8x128xf32>
    %44 = arith.negf %43 : vector<8x128xf32>
    %45 = math.exp %44 : vector<8x128xf32>
    %cst_32 = arith.constant 1.000000e+00 : f32
    %46 = vector.broadcast %cst_32 : f32 to vector<8x128xf32>
    %47 = arith.addf %46, %45 : vector<8x128xf32>
    %48 = arith.divf %46, %47 : vector<8x128xf32>
    %c0_33 = arith.constant 0 : index
    %c0_34 = arith.constant 0 : index
    %49 = vector.load %arg8[%c0_33, %c0_34] : memref<8x128xf32, #tpu.memory_space<vmem>>, vector<8x128xf32>
    tpu.vector_store %arg8[%c0_33, %c0_34], %48 {strides = array<i32>} : memref<8x128xf32, #tpu.memory_space<vmem>>, vector<8x128xf32>,
    return
  }
  func.func @transform_1(%arg0: i32, %arg1: memref<256xi32, #tpu.memory_space<smem>>) -> (i32, i32, i32) {
    %c0_i32 = arith.constant 0 : i32
    %c0_i32_0 = arith.constant 0 : i32
    %c0_i32_1 = arith.constant 0 : i32
    %c0_i32_2 = arith.constant 0 : i32
    return %c0_i32, %c0_i32_0, %c0_i32_1 : i32, i32, i32
  }
  func.func @transform_2(%arg0: i32, %arg1: memref<256xi32, #tpu.memory_space<smem>>) -> (i32, i32) {
    %c0_i32 = arith.constant 0 : i32
    %c0_i32_0 = arith.constant 0 : i32
    %c0_i32_1 = arith.constant 0 : i32
    return %c0_i32, %c0_i32_0 : i32, i32
  }
  func.func @transform_3(%arg0: i32, %arg1: memref<256xi32, #tpu.memory_space<smem>>) -> (i32, i32) {
    %c0_i32 = arith.constant 0 : i32
    %c0_i32_0 = arith.constant 0 : i32
    %c0_i32_1 = arith.constant 0 : i32
    return %c0_i32, %c0_i32_0 : i32, i32
  }
  func.func @transform_4(%arg0: i32, %arg1: memref<256xi32, #tpu.memory_space<smem>>) -> (i32, i32) {
    %c0_i32 = arith.constant 0 : i32
    %c0_i32_0 = arith.constant 0 : i32
    %c0_i32_1 = arith.constant 0 : i32
    return %c0_i32, %c0_i32_0 : i32, i32
  }
  func.func @transform_5(%arg0: i32, %arg1: memref<256xi32, #tpu.memory_space<smem>>) -> (i32, i32) {
    %c0_i32 = arith.constant 0 : i32
    %c0_i32_0 = arith.constant 0 : i32
    %c0_i32_1 = arith.constant 0 : i32
    return %c0_i32, %c0_i32_0 : i32, i32
  }
  func.func @transform_6(%arg0: i32, %arg1: memref<256xi32, #tpu.memory_space<smem>>) -> (i32, i32) {
    %c0_i32 = arith.constant 0 : i32
    %c0_i32_0 = arith.constant 0 : i32
    return %arg0, %c0_i32 : i32, i32
  }
}

</mosaic_0001>

<llo_original>
// kernel: cnn_forward.1
$region0: #{cnn_forward.1}
  #allocation0 [shape = 'u32[]', space=smem, size = 0x4, offset = 0x4, fixed_abs, tag = 'smem constant byte address 0x4 - core index']
  #allocation1 [shape = 'u32[72,128]{1,0:T(1,128)}', space=vmem, size = 0x9000, scoped, tag = 'internal scratch']
  #allocation2 [shape = 'f32[128,128]{1,0:T(8,128)}', space=vmem, size = 0x10000, scoped, tag = 'scratch operand']
  #allocation3 [shape = 's32[1]{0}', space=sflag, size = 0x4, scoped, tag = 'scratch operand']
  #allocation4 [shape = 's32[1]{0}', space=sflag, size = 0x4, scoped, tag = 'scoped memory for cnn_forward.1']
  #allocation5 [shape = 'u8[1024]{0}', space=smem, size = 0x400, scoped, tag = 'prefetched SMEM operand 0']
  #allocation12 [shape = 's32[]', space=sflag, size = 0x4, offset = 0, fixed_abs, tag = 'sflag constant byte address 0x0 - dummy sync flag']
  #allocation13 [shape = 's32[]', space=sflag, size = 0x4, offset = 0, fixed_abs, tag = 'sflag constant byte address 0x0 - dummy sync flag']
  #allocation14 [shape = 'u32[]', space=smem, size = 0x4, offset = 0x44, fixed_abs, tag = 'smem constant byte address 0x44 - assertion arg 0']
  #allocation15 [shape = 'u32[]', space=smem, size = 0x4, offset = 0x48, fixed_abs, tag = 'smem constant byte address 0x48 - assertion arg 1']
  %s0 = inlined_call_operand.vmem [shape: s32[256], index: 0, kind: input, shape index: {}]
  %s1 = inlined_call_operand.hbm [shape: f32[51,128], index: 1, kind: input, shape index: {}]
  %s2 = inlined_call_operand.hbm [shape: bf16[5,128,128], index: 2, kind: input, shape index: {}]
  %s3 = inlined_call_operand.vmem [shape: f32[1,128], index: 3, kind: input, shape index: {}]
  %s4 = inlined_call_operand.vmem [shape: f32[16,128], index: 4, kind: input, shape index: {}]
  %s5 = inlined_call_operand.hbm [shape: bf16[128,128], index: 5, kind: input, shape index: {}]
  %s6 = inlined_call_operand.vmem [shape: f32[1,128], index: 6, kind: input, shape index: {}]
  %s7 = inlined_call_operand.hbm [shape: f32[16,128], index: 7, kind: output, shape index: {}]
  %s8 = sld [smem:[#allocation0]]
  $region79: #{cnn_forward.1} parent=0
    _
  %s10 = ssub.s32 1, %s8
  %s11 = scalar_select 0, %s10, %s8
  %s13 = sshll.u32 %s0, 4
  %s14 = int_to_ptr.vmem [resolvable:$true] %s13
  %16 = dma.vmem_to_smem %s14, 32, [#allocation5], [#allocation4]
  %18 = dma.done [#allocation4], 32
  %19 = sfence
  $region1: #{cnn_forward.1} parent=0
    #allocation6 [shape = 'u8[163840]{0}', space=vmem, size = 0x28000, scoped, tag = 'input window, operand 2, single buffered']
    #allocation7 [shape = 's32[2]{0}', space=sflag, size = 0x8, scoped, tag = 'scoped memory for cnn_forward.1']
    #allocation8 [shape = 's32[2]{0}', space=sflag, size = 0x8, scoped, tag = 'scoped memory for cnn_forward.1']
    #allocation9 [shape = 'u8[32768]{0}', space=vmem, size = 0x8000, scoped, tag = 'input window, operand 5, single buffered']
    #allocation10 [shape = 's32[1]{0}', space=sflag, size = 0x4, scoped, tag = 'scoped memory for cnn_forward.1']
    #allocation11 [shape = 'u8[8192]{0}', space=vmem, size = 0x2000, scoped, tag = 'output window, operand 0']
    %20 = vsyncpa [#allocation7], 0
    %21 = vsyncpa [#allocation10], 0
    %22 = vsyncpa [#allocation8], 0
    %s23 = scalar_lea.sflag [#allocation8], 1
    %24 = vsyncpa %s23, 0
    loop: start=0, step=1, limit=4
    $region2: #{cnn_forward.1} parent=1 // loop_pre_header
      _
    $region3: #{cnn_forward.1} parent=1 // loop_header
      %s26 = sphi 0, %s30
      %p27 = scmp.ge.s32.totalorder %s26, 4
      %s34 = sphi 0, %s34
      %s36 = sphi 0, %s34
      %s37 = sphi 0, %s36
      %s51 = sphi 0, %s37
      %s55 = sphi 0, %s55
      %s57 = sphi 0, %s55
      %s58 = sphi 0, %s57
      %s72 = sphi 0, %s58
      %s76 = sphi 0, %s76
      %s78 = sphi 0, %s76
      %s79 = sphi 0, %s78
      %s93 = sphi 0, %s79
      %s97 = sphi 0, %s97
      %s99 = sphi 0, %s97
      %s100 = sphi 0, %s99
      %s114 = sphi 0, %s100
      %s118 = sphi 0, %s118
      %s120 = sphi 0, %s118
      %s121 = sphi 0, %s120
      %s135 = sphi 0, %s121
      %s141 = sphi 0, %s143
      %s144 = sphi 0, %s141
      %s145 = sphi 0, %s144
      %s161 = sphi 0, %s145
    $region4: #{cnn_forward.1} parent=1 // loop_header_branch
      %29 = sbr.rel (%p27) target = $region8
    $region5: #{cnn_forward.1} parent=1 // loop_body
      %s31 = ssub.s32 %s26, 1
      %s32 = ssub.s32 %s26, 2
      %s33 = sadd.s32 %s26, 1
      %s35 = sadd.s32 %s34, 1
      %p38 = scmp.eq.s32.totalorder %s26, 1
      %p39 = scmp.ne.s32.totalorder %s34, %s36
      %p40 = scmp.eq.s32.totalorder %s26, 0
      %p41 = por %p39, %p40
      %p42 = scmp.ne.s32.totalorder %s34, %s36
      %p43 = scmp.eq.s32.totalorder %s31, 1
      %p44 = por %p42, %p43
      %p45 = scmp.ne.s32.totalorder %s36, %s37
      %p46 = scmp.eq.s32.totalorder %s31, 0
      %p47 = por %p45, %p46
      %p48 = scmp.ne.s32.totalorder %s36, %s37
      %p49 = scmp.eq.s32.totalorder %s32, 1
      %p50 = por %p48, %p49
      %p52 = scmp.ne.s32.totalorder %s37, %s51
      %p53 = scmp.eq.s32.totalorder %s32, 0
      %p54 = por %p52, %p53
      %s56 = sadd.s32 %s55, 1
      %p59 = scmp.eq.s32.totalorder %s26, 1
      %p60 = scmp.ne.s32.totalorder %s55, %s57
      %p61 = scmp.eq.s32.totalorder %s26, 0
      %p62 = por %p60, %p61
      %p63 = scmp.ne.s32.totalorder %s55, %s57
      %p64 = scmp.eq.s32.totalorder %s31, 1
      %p65 = por %p63, %p64
      %p66 = scmp.ne.s32.totalorder %s57, %s58
      %p67 = scmp.eq.s32.totalorder %s31, 0
      %p68 = por %p66, %p67
      %p69 = scmp.ne.s32.totalorder %s57, %s58
      %p70 = scmp.eq.s32.totalorder %s32, 1
      %p71 = por %p69, %p70
      %p73 = scmp.ne.s32.totalorder %s58, %s72
      %p74 = scmp.eq.s32.totalorder %s32, 0
      %p75 = por %p73, %p74
      %s77 = sadd.s32 %s76, 1
      %p80 = scmp.eq.s32.totalorder %s26, 1
      %p81 = scmp.ne.s32.totalorder %s76, %s78
      %p82 = scmp.eq.s32.totalorder %s26, 0
      %p83 = por %p81, %p82
      %p84 = scmp.ne.s32.totalorder %s76, %s78
      %p85 = scmp.eq.s32.totalorder %s31, 1
      %p86 = por %p84, %p85
      %p87 = scmp.ne.s32.totalorder %s78, %s79
      %p88 = scmp.eq.s32.totalorder %s31, 0
      %p89 = por %p87, %p88
      %p90 = scmp.ne.s32.totalorder %s78, %s79
      %p91 = scmp.eq.s32.totalorder %s32, 1
      %p92 = por %p90, %p91
      %p94 = scmp.ne.s32.totalorder %s79, %s93
      %p95 = scmp.eq.s32.totalorder %s32, 0
      %p96 = por %p94, %p95
      %s98 = sadd.s32 %s97, 1
      %p101 = scmp.eq.s32.totalorder %s26, 1
      %p102 = scmp.ne.s32.totalorder %s97, %s99
      %p103 = scmp.eq.s32.totalorder %s26, 0
      %p104 = por %p102, %p103
      %p105 = scmp.ne.s32.totalorder %s97, %s99
      %p106 = scmp.eq.s32.totalorder %s31, 1
      %p107 = por %p105, %p106
      %p108 = scmp.ne.s32.totalorder %s99, %s100
      %p109 = scmp.eq.s32.totalorder %s31, 0
      %p110 = por %p108, %p109
      %p111 = scmp.ne.s32.totalorder %s99, %s100
      %p112 = scmp.eq.s32.totalorder %s32, 1
      %p113 = por %p111, %p112
      %p115 = scmp.ne.s32.totalorder %s100, %s114
      %p116 = scmp.eq.s32.totalorder %s32, 0
      %p117 = por %p115, %p116
      %s119 = sadd.s32 %s118, 1
      %p122 = scmp.eq.s32.totalorder %s26, 1
      %p123 = scmp.ne.s32.totalorder %s118, %s120
      %p124 = scmp.eq.s32.totalorder %s26, 0
      %p125 = por %p123, %p124
      %p126 = scmp.ne.s32.totalorder %s118, %s120
      %p127 = scmp.eq.s32.totalorder %s31, 1
      %p128 = por %p126, %p127
      %p129 = scmp.ne.s32.totalorder %s120, %s121
      %p130 = scmp.eq.s32.totalorder %s31, 0
      %p131 = por %p129, %p130
      %p132 = scmp.ne.s32.totalorder %s120, %s121
      %p133 = scmp.eq.s32.totalorder %s32, 1
      %p134 = por %p132, %p133
      %p136 = scmp.ne.s32.totalorder %s121, %s135
      %p137 = scmp.eq.s32.totalorder %s32, 0
      %p138 = por %p136, %p137
      %s139 = ssub.s32 %s26, %s33
      %p140 = scmp.eq.s32.totalorder %s139, 0
      %s142 = sadd.s32 %s141, 1
      %s143 = scalar_select %p140, %s141, %s142
      %p146 = pneg %p140
      %p147 = scmp.eq.s32.totalorder %s26, 1
      %p148 = por %p146, %p147
      %p149 = scmp.ne.s32.totalorder %s141, %s144
      %p150 = scmp.eq.s32.totalorder %s26, 0
      %p151 = por %p149, %p150
      %p152 = scmp.ne.s32.totalorder %s141, %s144
      %p153 = scmp.eq.s32.totalorder %s31, 1
      %p154 = por %p152, %p153
      %p155 = scmp.ne.s32.totalorder %s144, %s145
      %p156 = scmp.eq.s32.totalorder %s31, 0
      %p157 = por %p155, %p156
      %p158 = scmp.ne.s32.totalorder %s144, %s145
      %p159 = scmp.eq.s32.totalorder %s32, 1
      %p160 = por %p158, %p159
      %p162 = scmp.ne.s32.totalorder %s145, %s161
      %p163 = scmp.eq.s32.totalorder %s32, 0
      %p164 = por %p162, %p163
      %p165 = scmp.le.s32.totalorder 1, %s26
      %p166 = scmp.lt.s32.totalorder %s26, 3
      %p167 = pnand %p165, %p166
      %p168 = pneg %p167
      // Predicated region
      $region9: #{cnn_forward.1} parent=5 // pred_check
        _
      $region10: #{cnn_forward.1} parent=5 // pred_check_branch
        %170 = sbr.rel (%p167) target = $region12
      $region11: #{cnn_forward.1} parent=5 // pred_region
        %s171 = ssub.s32 %s26, 1
        // Predicated region
        $region13: #{cnn_forward.1} parent=11 // pred_check
          %p172 = pneg %p47
        $region14: #{cnn_forward.1} parent=11 // pred_check_branch
          %174 = sbr.rel (%p172) target = $region16
        $region15: #{cnn_forward.1} parent=11 // pred_region
          %176 = vsyncadd [#allocation7], 0
          %s177 = sshll.u32 %s2, 4
          %s178 = int_to_ptr.hbm [resolvable:$true] %s177
          %s179 = sshll.u32 [#allocation6], 4
          %s180 = int_to_ptr.vmem [resolvable:$true] %s179
          %185 = dma.hbm_to_vmem [thread:$0]  %s178, 5120, %s180, [#allocation7], 64, 64, 4
        $region16: #{cnn_forward.1} parent=11 // pred_fallthru
          _
        // Predicated region
        $region17: #{cnn_forward.1} parent=11 // pred_check
          %p186 = pneg %p68
        $region18: #{cnn_forward.1} parent=11 // pred_check_branch
          %188 = sbr.rel (%p186) target = $region20
        $region19: #{cnn_forward.1} parent=11 // pred_region
          _
        $region20: #{cnn_forward.1} parent=11 // pred_fallthru
          _
        // Predicated region
        $region21: #{cnn_forward.1} parent=11 // pred_check
          %p189 = pneg %p89
        $region22: #{cnn_forward.1} parent=11 // pred_check_branch
          %191 = sbr.rel (%p189) target = $region24
        $region23: #{cnn_forward.1} parent=11 // pred_region
          _
        $region24: #{cnn_forward.1} parent=11 // pred_fallthru
          _
        // Predicated region
        $region25: #{cnn_forward.1} parent=11 // pred_check
          %p192 = pneg %p110
        $region26: #{cnn_forward.1} parent=11 // pred_check_branch
          %194 = sbr.rel (%p192) target = $region28
        $region27: #{cnn_forward.1} parent=11 // pred_region
          %196 = vsyncadd [#allocation10], 0
          %s197 = sshll.u32 %s5, 4
          %s198 = int_to_ptr.hbm [resolvable:$true] %s197
          %s199 = sshll.u32 [#allocation9], 4
          %s200 = int_to_ptr.vmem [resolvable:$true] %s199
          %205 = dma.hbm_to_vmem [thread:$0]  %s198, 1024, %s200, [#allocation10], 64, 64, 4
        $region28: #{cnn_forward.1} parent=11 // pred_fallthru
          _
        // Predicated region
        $region29: #{cnn_forward.1} parent=11 // pred_check
          %p206 = pneg %p131
        $region30: #{cnn_forward.1} parent=11 // pred_check_branch
          %208 = sbr.rel (%p206) target = $region32
        $region31: #{cnn_forward.1} parent=11 // pred_region
          _
        $region32: #{cnn_forward.1} parent=11 // pred_fallthru
          _
      $region12: #{cnn_forward.1} parent=5 // pred_fallthru
        _
      %p209 = scmp.lt.s32.totalorder %s26, 2
      // Predicated region
      $region33: #{cnn_forward.1} parent=5 // pred_check
        %p210 = pneg %p209
      $region34: #{cnn_forward.1} parent=5 // pred_check_branch
        %212 = sbr.rel (%p210) target = $region36
      $region35: #{cnn_forward.1} parent=5 // pred_region
        _
      $region36: #{cnn_forward.1} parent=5 // pred_fallthru
        _
      %p213 = scmp.le.s32.totalorder 1, %s26
      %p214 = scmp.lt.s32.totalorder %s26, 3
      %p215 = pnand %p213, %p214
      %p216 = pneg %p215
      // Predicated region
      $region37: #{cnn_forward.1} parent=5 // pred_check
        _
      $region38: #{cnn_forward.1} parent=5 // pred_check_branch
        %218 = sbr.rel (%p215) target = $region40
      $region39: #{cnn_forward.1} parent=5 // pred_region
        %s219 = ssub.s32 %s26, 1
        // Predicated region
        $region41: #{cnn_forward.1} parent=39 // pred_check
          %p220 = pneg %p47
        $region42: #{cnn_forward.1} parent=39 // pred_check_branch
          %222 = sbr.rel (%p220) target = $region44
        $region43: #{cnn_forward.1} parent=39 // pred_region
          %224 = dma.done [#allocation7], 5120
        $region44: #{cnn_forward.1} parent=39 // pred_fallthru
          _
        // Predicated region
        $region45: #{cnn_forward.1} parent=39 // pred_check
          %p225 = pneg %p110
        $region46: #{cnn_forward.1} parent=39 // pred_check_branch
          %227 = sbr.rel (%p225) target = $region48
        $region47: #{cnn_forward.1} parent=39 // pred_region
          %229 = dma.done [#allocation10], 1024
        $region48: #{cnn_forward.1} parent=39 // pred_fallthru
          _
        %p230 = pneg %p47
        %p231 = pneg %p44
        %p232 = pneg %p68
        %p233 = pneg %p65
        %p234 = pneg %p89
        %p235 = pneg %p86
        %p236 = pneg %p110
        %p237 = pneg %p107
        %p238 = pneg %p131
        %p239 = pneg %p128
        %p240 = pneg %p157
        %p241 = pneg %p154
        %s242 = sand.u32 %s144, 1
        %s243 = scalar_lea.sflag [#allocation8], %s242
        %s244 = sand.u32 %s144, 1
        %s245 = smul.addr %s244, 8
        %s246 = scalar_lea.vmem [#allocation11], %s245
        %s247 = smul.u32 %s31, 128
        loop: start=0, step=1, limit=128
        $region49: #{cnn_forward.1} parent=39 // loop_pre_header
          _
        $region50: #{cnn_forward.1} parent=39 // loop_header
          %s249 = sphi 0, %s253
          %p250 = scmp.ge.s32.totalorder %s249, 128
        $region51: #{cnn_forward.1} parent=39 // loop_header_branch
          %252 = sbr.rel (%p250) target = $region55
        $region52: #{cnn_forward.1} parent=39 // loop_body
          %s254 = sadd.s32 %s247, %s249
          %s255 = sld [smem:[#allocation5 + %s254]]
          %s256 = scalar_lea.hbm %s1, %s255
          %s257 = scalar_lea.vmem [#allocation2], %s249
          // Predicated region
          $region56: #{cnn_forward.1} parent=52 // pred_check
            _
          $region57: #{cnn_forward.1} parent=52 // pred_check_branch
            %259 = sbr.rel target = $region59
          $region58: #{cnn_forward.1} parent=52 // pred_region
            %260 = sst [smem:[#allocation14]] [#allocation13]
            %261 = sst [smem:[#allocation15]] [#allocation12]
          $region59: #{cnn_forward.1} parent=52 // pred_fallthru
            _
          %263 = shalt.err (0)
          %s265 = sshll.u32 %s256, 4
          %s266 = int_to_ptr.hbm [resolvable:$true] %s265
          %s267 = sshll.u32 %s257, 4
          %s268 = int_to_ptr.vmem [resolvable:$true] %s267
          %270 = dma.hbm_to_vmem [thread:$0]  %s266, 16, %s268, [#allocation3]
        $region53: #{cnn_forward.1} parent=39 // loop_footer
          %s253 = sadd.s32 1, %s249
        $region54: #{cnn_forward.1} parent=39 // loop_footer_branch
          %248 = sbr.rel target = $region50
        $region55: #{cnn_forward.1} parent=39 // loop_exit
          _
        loop: start=0, step=1, limit=128
        $region60: #{cnn_forward.1} parent=39 // loop_pre_header
          _
        $region61: #{cnn_forward.1} parent=39 // loop_header
          %s272 = sphi 0, %s276
          %p273 = scmp.ge.s32.totalorder %s272, 128
        $region62: #{cnn_forward.1} parent=39 // loop_header_branch
          %275 = sbr.rel (%p273) target = $region66
        $region63: #{cnn_forward.1} parent=39 // loop_body
          %s277 = smul.u32 1, 1
          %s278 = sshll.u32 %s277, 4
          %279 = dma.done [#allocation3], %s278
        $region64: #{cnn_forward.1} parent=39 // loop_footer
          %s276 = sadd.s32 1, %s272
        $region65: #{cnn_forward.1} parent=39 // loop_footer_branch
          %271 = sbr.rel target = $region61
        $region66: #{cnn_forward.1} parent=39 // loop_exit
          _
        %v280 = vld [vmem:[#allocation2] sm:$0xff]
        %v281 = vld [vmem:[#allocation2 + $0x8] sm:$0xff]
        %v282 = vld [vmem:[#allocation2 + $0x10] sm:$0xff]
        %v283 = vld [vmem:[#allocation2 + $0x18] sm:$0xff]
        %v284 = vld [vmem:[#allocation2 + $0x20] sm:$0xff]
        %v285 = vld [vmem:[#allocation2 + $0x28] sm:$0xff]
        %v286 = vld [vmem:[#allocation2 + $0x30] sm:$0xff]
        %v287 = vld [vmem:[#allocation2 + $0x38] sm:$0xff]
        %v288 = vld [vmem:[#allocation2 + $0x40] sm:$0xff]
        %v289 = vld [vmem:[#allocation2 + $0x48] sm:$0xff]
        %v290 = vld [vmem:[#allocation2 + $0x50] sm:$0xff]
        %v291 = vld [vmem:[#allocation2 + $0x58] sm:$0xff]
        %v292 = vld [vmem:[#allocation2 + $0x60] sm:$0xff]
        %v293 = vld [vmem:[#allocation2 + $0x68] sm:$0xff]
        %v294 = vld [vmem:[#allocation2 + $0x70] sm:$0xff]
        %v295 = vld [vmem:[#allocation2 + $0x78] sm:$0xff]
        %v296 = vpack.c.bf16 %v281, %v280
        %v297 = vpack.c.bf16 %v283, %v282
        %v298 = vpack.c.bf16 %v285, %v284
        %v299 = vpack.c.bf16 %v287, %v286
        %v300 = vpack.c.bf16 %v289, %v288
        %v301 = vpack.c.bf16 %v291, %v290
        %v302 = vpack.c.bf16 %v293, %v292
        %v303 = vpack.c.bf16 %v295, %v294
        %v304 = vld [vmem:[#allocation6] sm:$0xf]
        %v305 = vld [vmem:[#allocation6 + $0x4] sm:$0xf]
        %v306 = vld [vmem:[#allocation6 + $0x8] sm:$0xf]
        %v307 = vld [vmem:[#allocation6 + $0xc] sm:$0xf]
        %v308 = vld [vmem:[#allocation6 + $0x10] sm:$0xf]
        %v309 = vld [vmem:[#allocation6 + $0x14] sm:$0xf]
        %v310 = vld [vmem:[#allocation6 + $0x18] sm:$0xf]
        %v311 = vld [vmem:[#allocation6 + $0x1c] sm:$0xf]
        %v312 = vld [vmem:[#allocation6 + $0x20] sm:$0xf]
        %v313 = vld [vmem:[#allocation6 + $0x24] sm:$0xf]
        %v314 = vld [vmem:[#allocation6 + $0x28] sm:$0xf]
        %v315 = vld [vmem:[#allocation6 + $0x2c] sm:$0xf]
        %v316 = vld [vmem:[#allocation6 + $0x30] sm:$0xf]
        %v317 = vld [vmem:[#allocation6 + $0x34] sm:$0xf]
        %v318 = vld [vmem:[#allocation6 + $0x38] sm:$0xf]
        %v319 = vld [vmem:[#allocation6 + $0x3c] sm:$0xf]
        %s320 = scalar_lea.vmem [#allocation6], 64
        %v321 = vld [vmem:[%s320] sm:$0xf]
        %v322 = vld [vmem:[%s320 + $0x4] sm:$0xf]
        %v323 = vld [vmem:[%s320 + $0x8] sm:$0xf]
        %v324 = vld [vmem:[%s320 + $0xc] sm:$0xf]
        %v325 = vld [vmem:[%s320 + $0x10] sm:$0xf]
        %v326 = vld [vmem:[%s320 + $0x14] sm:$0xf]
        %v327 = vld [vmem:[%s320 + $0x18] sm:$0xf]
        %v328 = vld [vmem:[%s320 + $0x1c] sm:$0xf]
        %v329 = vld [vmem:[%s320 + $0x20] sm:$0xf]
        %v330 = vld [vmem:[%s320 + $0x24] sm:$0xf]
        %v331 = vld [vmem:[%s320 + $0x28] sm:$0xf]
        %v332 = vld [vmem:[%s320 + $0x2c] sm:$0xf]
        %v333 = vld [vmem:[%s320 + $0x30] sm:$0xf]
        %v334 = vld [vmem:[%s320 + $0x34] sm:$0xf]
        %v335 = vld [vmem:[%s320 + $0x38] sm:$0xf]
        %v336 = vld [vmem:[%s320 + $0x3c] sm:$0xf]
        %v353 = vunpack.c.l.b16 %v321
        %v354 = vunpack.c.l.b16 %v322
        %v355 = vunpack.c.l.b16 %v323
        %v356 = vunpack.c.l.b16 %v324
        %v357 = vunpack.c.l.b16 %v325
        %v358 = vunpack.c.l.b16 %v326
        %v359 = vunpack.c.l.b16 %v327
        %v360 = vunpack.c.l.b16 %v328
        %v361 = vunpack.c.l.b16 %v329
        %v362 = vunpack.c.l.b16 %v330
        %v363 = vunpack.c.l.b16 %v331
        %v364 = vunpack.c.l.b16 %v332
        %v365 = vunpack.c.l.b16 %v333
        %v366 = vunpack.c.l.b16 %v334
        %v367 = vunpack.c.l.b16 %v335
        %v368 = vunpack.c.l.b16 %v336
        %v369 = vpack.c.b16 %v354, %v353
        %v370 = vpack.c.b16 %v356, %v355
        %v371 = vpack.c.b16 %v358, %v357
        %v372 = vpack.c.b16 %v360, %v359
        %v373 = vpack.c.b16 %v362, %v361
        %v374 = vpack.c.b16 %v364, %v363
        %v375 = vpack.c.b16 %v366, %v365
        %v376 = vpack.c.b16 %v368, %v367
        %385 = vmatpush.bf16.msra.mxu0 %v376
        %386 = vmatpush.bf16.msra.mxu0 %v375
        %387 = vmatpush.bf16.msra.mxu0 %v374
        %388 = vmatpush.bf16.msra.mxu0 %v373
        %389 = vmatpush.bf16.msra.mxu0 %v372
        %390 = vmatpush.bf16.msra.mxu0 %v371
        %391 = vmatpush.bf16.msra.mxu0 %v370
        %392 = vmatpush.bf16.msra.mxu0 %v369
        %393 = vmatmul.bf16.gmra.mxu0 %v296
        %v394 = vpop.f32.mrf.mxu0
        %v395 = vadd.f32 0.0, %v394
        %v396 = vpop.f32.mrf.mxu0
        %v397 = vadd.f32 0.0, %v396
        %398 = vmatmul.bf16.gmra.mxu0 %v297
        %v399 = vpop.f32.mrf.mxu0
        %v400 = vadd.f32 0.0, %v399
        %v401 = vpop.f32.mrf.mxu0
        %v402 = vadd.f32 0.0, %v401
        %403 = vmatmul.bf16.gmra.mxu0 %v298
        %v404 = vpop.f32.mrf.mxu0
        %v405 = vadd.f32 0.0, %v404
        %v406 = vpop.f32.mrf.mxu0
        %v407 = vadd.f32 0.0, %v406
        %408 = vmatmul.bf16.gmra.mxu0 %v299
        %v409 = vpop.f32.mrf.mxu0
        %v410 = vadd.f32 0.0, %v409
        %v411 = vpop.f32.mrf.mxu0
        %v412 = vadd.f32 0.0, %v411
        %413 = vmatmul.bf16.gmra.mxu0 %v300
        %v414 = vpop.f32.mrf.mxu0
        %v415 = vadd.f32 0.0, %v414
        %v416 = vpop.f32.mrf.mxu0
        %v417 = vadd.f32 0.0, %v416
        %418 = vmatmul.bf16.gmra.mxu0 %v301
        %v419 = vpop.f32.mrf.mxu0
        %v420 = vadd.f32 0.0, %v419
        %v421 = vpop.f32.mrf.mxu0
        %v422 = vadd.f32 0.0, %v421
        %423 = vmatmul.bf16.gmra.mxu0 %v302
        %v424 = vpop.f32.mrf.mxu0
        %v425 = vadd.f32 0.0, %v424
        %v426 = vpop.f32.mrf.mxu0
        %v427 = vadd.f32 0.0, %v426
        %428 = vmatmul.bf16.gmra.mxu0 %v303
        %v429 = vpop.f32.mrf.mxu0
        %v430 = vadd.f32 0.0, %v429
        %v431 = vpop.f32.mrf.mxu0
        %v432 = vadd.f32 0.0, %v431
        %433 = vdwg.mxu0
        %v434 = vrot.slane %v395, 1
        %v435 = vrot.slane %v397, 1
        %v436 = vrot.slane %v400, 1
        %v437 = vrot.slane %v402, 1
        %v438 = vrot.slane %v405, 1
        %v439 = vrot.slane %v407, 1
        %v440 = vrot.slane %v410, 1
        %v441 = vrot.slane %v412, 1
        %v442 = vrot.slane %v415, 1
        %v443 = vrot.slane %v417, 1
        %v444 = vrot.slane %v420, 1
        %v445 = vrot.slane %v422, 1
        %v446 = vrot.slane %v425, 1
        %v447 = vrot.slane %v427, 1
        %v448 = vrot.slane %v430, 1
        %v449 = vrot.slane %v432, 1
        %v450 = vlaneseq
        %v451 = vshrl.u32 %v450, 7
        %vm452 = vcmp.lt.s32.totalorder %v451, 7
        %v453 = vsel %vm452, %v448, %v449
        %v454 = vsel %vm452, %v447, %v448
        %v455 = vsel %vm452, %v446, %v447
        %v456 = vsel %vm452, %v445, %v446
        %v457 = vsel %vm452, %v444, %v445
        %v458 = vsel %vm452, %v443, %v444
        %v459 = vsel %vm452, %v442, %v443
        %v460 = vsel %vm452, %v441, %v442
        %v461 = vsel %vm452, %v440, %v441
        %v462 = vsel %vm452, %v439, %v440
        %v463 = vsel %vm452, %v438, %v439
        %v464 = vsel %vm452, %v437, %v438
        %v465 = vsel %vm452, %v436, %v437
        %v466 = vsel %vm452, %v435, %v436
        %v467 = vsel %vm452, %v434, %v435
        %v468 = vsel %vm452, %v449, %v434
        %v485 = vunpack.c.l.b16 %v304
        %v486 = vunpack.c.l.b16 %v305
        %v487 = vunpack.c.l.b16 %v306
        %v488 = vunpack.c.l.b16 %v307
        %v489 = vunpack.c.l.b16 %v308
        %v490 = vunpack.c.l.b16 %v309
        %v491 = vunpack.c.l.b16 %v310
        %v492 = vunpack.c.l.b16 %v311
        %v493 = vunpack.c.l.b16 %v312
        %v494 = vunpack.c.l.b16 %v313
        %v495 = vunpack.c.l.b16 %v314
        %v496 = vunpack.c.l.b16 %v315
        %v497 = vunpack.c.l.b16 %v316
        %v498 = vunpack.c.l.b16 %v317
        %v499 = vunpack.c.l.b16 %v318
        %v500 = vunpack.c.l.b16 %v319
        %v501 = vpack.c.b16 %v486, %v485
        %v502 = vpack.c.b16 %v488, %v487
        %v503 = vpack.c.b16 %v490, %v489
        %v504 = vpack.c.b16 %v492, %v491
        %v505 = vpack.c.b16 %v494, %v493
        %v506 = vpack.c.b16 %v496, %v495
        %v507 = vpack.c.b16 %v498, %v497
        %v508 = vpack.c.b16 %v500, %v499
        %517 = vmatpush.bf16.msra.mxu0 %v508
        %518 = vmatpush.bf16.msra.mxu0 %v507
        %519 = vmatpush.bf16.msra.mxu0 %v506
        %520 = vmatpush.bf16.msra.mxu0 %v505
        %521 = vmatpush.bf16.msra.mxu0 %v504
        %522 = vmatpush.bf16.msra.mxu0 %v503
        %523 = vmatpush.bf16.msra.mxu0 %v502
        %524 = vmatpush.bf16.msra.mxu0 %v501
        %525 = vmatmul.bf16.gmra.mxu0 %v296
        %v526 = vpop.f32.mrf.mxu0
        %v527 = vadd.f32 %v467, %v526
        %v528 = vpop.f32.mrf.mxu0
        %v529 = vadd.f32 %v466, %v528
        %530 = vmatmul.bf16.gmra.mxu0 %v297
        %v531 = vpop.f32.mrf.mxu0
        %v532 = vadd.f32 %v465, %v531
        %v533 = vpop.f32.mrf.mxu0
        %v534 = vadd.f32 %v464, %v533
        %535 = vmatmul.bf16.gmra.mxu0 %v298
        %v536 = vpop.f32.mrf.mxu0
        %v537 = vadd.f32 %v463, %v536
        %v538 = vpop.f32.mrf.mxu0
        %v539 = vadd.f32 %v462, %v538
        %540 = vmatmul.bf16.gmra.mxu0 %v299
        %v541 = vpop.f32.mrf.mxu0
        %v542 = vadd.f32 %v461, %v541
        %v543 = vpop.f32.mrf.mxu0
        %v544 = vadd.f32 %v460, %v543
        %545 = vmatmul.bf16.gmra.mxu0 %v300
        %v546 = vpop.f32.mrf.mxu0
        %v547 = vadd.f32 %v459, %v546
        %v548 = vpop.f32.mrf.mxu0
        %v549 = vadd.f32 %v458, %v548
        %550 = vmatmul.bf16.gmra.mxu0 %v301
        %v551 = vpop.f32.mrf.mxu0
        %v552 = vadd.f32 %v457, %v551
        %v553 = vpop.f32.mrf.mxu0
        %v554 = vadd.f32 %v456, %v553
        %555 = vmatmul.bf16.gmra.mxu0 %v302
        %v556 = vpop.f32.mrf.mxu0
        %v557 = vadd.f32 %v455, %v556
        %v558 = vpop.f32.mrf.mxu0
        %v559 = vadd.f32 %v454, %v558
        %560 = vmatmul.bf16.gmra.mxu0 %v303
        %v561 = vpop.f32.mrf.mxu0
        %v562 = vadd.f32 %v453, %v561
        %v563 = vpop.f32.mrf.mxu0
        %v564 = vadd.f32 %v468, %v563
        %565 = vdwg.mxu0
        %s566 = scalar_lea.vmem [#allocation6], 128
        %v567 = vld [vmem:[%s566] sm:$0xf]
        %v568 = vld [vmem:[%s566 + $0x4] sm:$0xf]
        %v569 = vld [vmem:[%s566 + $0x8] sm:$0xf]
        %v570 = vld [vmem:[%s566 + $0xc] sm:$0xf]
        %v571 = vld [vmem:[%s566 + $0x10] sm:$0xf]
        %v572 = vld [vmem:[%s566 + $0x14] sm:$0xf]
        %v573 = vld [vmem:[%s566 + $0x18] sm:$0xf]
        %v574 = vld [vmem:[%s566 + $0x1c] sm:$0xf]
        %v575 = vld [vmem:[%s566 + $0x20] sm:$0xf]
        %v576 = vld [vmem:[%s566 + $0x24] sm:$0xf]
        %v577 = vld [vmem:[%s566 + $0x28] sm:$0xf]
        %v578 = vld [vmem:[%s566 + $0x2c] sm:$0xf]
        %v579 = vld [vmem:[%s566 + $0x30] sm:$0xf]
        %v580 = vld [vmem:[%s566 + $0x34] sm:$0xf]
        %v581 = vld [vmem:[%s566 + $0x38] sm:$0xf]
        %v582 = vld [vmem:[%s566 + $0x3c] sm:$0xf]
        %v599 = vunpack.c.l.b16 %v567
        %v600 = vunpack.c.l.b16 %v568
        %v601 = vunpack.c.l.b16 %v569
        %v602 = vunpack.c.l.b16 %v570
        %v603 = vunpack.c.l.b16 %v571
        %v604 = vunpack.c.l.b16 %v572
        %v605 = vunpack.c.l.b16 %v573
        %v606 = vunpack.c.l.b16 %v574
        %v607 = vunpack.c.l.b16 %v575
        %v608 = vunpack.c.l.b16 %v576
        %v609 = vunpack.c.l.b16 %v577
        %v610 = vunpack.c.l.b16 %v578
        %v611 = vunpack.c.l.b16 %v579
        %v612 = vunpack.c.l.b16 %v580
        %v613 = vunpack.c.l.b16 %v581
        %v614 = vunpack.c.l.b16 %v582
        %v615 = vpack.c.b16 %v600, %v599
        %v616 = vpack.c.b16 %v602, %v601
        %v617 = vpack.c.b16 %v604, %v603
        %v618 = vpack.c.b16 %v606, %v605
        %v619 = vpack.c.b16 %v608, %v607
        %v620 = vpack.c.b16 %v610, %v609
        %v621 = vpack.c.b16 %v612, %v611
        %v622 = vpack.c.b16 %v614, %v613
        %631 = vmatpush.bf16.msra.mxu0 %v622
        %632 = vmatpush.bf16.msra.mxu0 %v621
        %633 = vmatpush.bf16.msra.mxu0 %v620
        %634 = vmatpush.bf16.msra.mxu0 %v619
        %635 = vmatpush.bf16.msra.mxu0 %v618
        %636 = vmatpush.bf16.msra.mxu0 %v617
        %637 = vmatpush.bf16.msra.mxu0 %v616
        %638 = vmatpush.bf16.msra.mxu0 %v615
        %639 = vmatmul.bf16.gmra.mxu0 %v296
        %v640 = vpop.f32.mrf.mxu0
        %v641 = vadd.f32 0.0, %v640
        %v642 = vpop.f32.mrf.mxu0
        %v643 = vadd.f32 0.0, %v642
        %644 = vmatmul.bf16.gmra.mxu0 %v297
        %v645 = vpop.f32.mrf.mxu0
        %v646 = vadd.f32 0.0, %v645
        %v647 = vpop.f32.mrf.mxu0
        %v648 = vadd.f32 0.0, %v647
        %649 = vmatmul.bf16.gmra.mxu0 %v298
        %v650 = vpop.f32.mrf.mxu0
        %v651 = vadd.f32 0.0, %v650
        %v652 = vpop.f32.mrf.mxu0
        %v653 = vadd.f32 0.0, %v652
        %654 = vmatmul.bf16.gmra.mxu0 %v299
        %v655 = vpop.f32.mrf.mxu0
        %v656 = vadd.f32 0.0, %v655
        %v657 = vpop.f32.mrf.mxu0
        %v658 = vadd.f32 0.0, %v657
        %659 = vmatmul.bf16.gmra.mxu0 %v300
        %v660 = vpop.f32.mrf.mxu0
        %v661 = vadd.f32 0.0, %v660
        %v662 = vpop.f32.mrf.mxu0
        %v663 = vadd.f32 0.0, %v662
        %664 = vmatmul.bf16.gmra.mxu0 %v301
        %v665 = vpop.f32.mrf.mxu0
        %v666 = vadd.f32 0.0, %v665
        %v667 = vpop.f32.mrf.mxu0
        %v668 = vadd.f32 0.0, %v667
        %669 = vmatmul.bf16.gmra.mxu0 %v302
        %v670 = vpop.f32.mrf.mxu0
        %v671 = vadd.f32 0.0, %v670
        %v672 = vpop.f32.mrf.mxu0
        %v673 = vadd.f32 0.0, %v672
        %674 = vmatmul.bf16.gmra.mxu0 %v303
        %v675 = vpop.f32.mrf.mxu0
        %v676 = vadd.f32 0.0, %v675
        %v677 = vpop.f32.mrf.mxu0
        %v678 = vadd.f32 0.0, %v677
        %679 = vdwg.mxu0
        %v680 = vrot.slane %v641, 2
        %v681 = vrot.slane %v643, 2
        %v682 = vrot.slane %v646, 2
        %v683 = vrot.slane %v648, 2
        %v684 = vrot.slane %v651, 2
        %v685 = vrot.slane %v653, 2
        %v686 = vrot.slane %v656, 2
        %v687 = vrot.slane %v658, 2
        %v688 = vrot.slane %v661, 2
        %v689 = vrot.slane %v663, 2
        %v690 = vrot.slane %v666, 2
        %v691 = vrot.slane %v668, 2
        %v692 = vrot.slane %v671, 2
        %v693 = vrot.slane %v673, 2
        %v694 = vrot.slane %v676, 2
        %v695 = vrot.slane %v678, 2
        %vm696 = vcmp.lt.s32.totalorder %v451, 6
        %v697 = vsel %vm696, %v694, %v695
        %v698 = vsel %vm696, %v693, %v694
        %v699 = vsel %vm696, %v692, %v693
        %v700 = vsel %vm696, %v691, %v692
        %v701 = vsel %vm696, %v690, %v691
        %v702 = vsel %vm696, %v689, %v690
        %v703 = vsel %vm696, %v688, %v689
        %v704 = vsel %vm696, %v687, %v688
        %v705 = vsel %vm696, %v686, %v687
        %v706 = vsel %vm696, %v685, %v686
        %v707 = vsel %vm696, %v684, %v685
        %v708 = vsel %vm696, %v683, %v684
        %v709 = vsel %vm696, %v682, %v683
        %v710 = vsel %vm696, %v681, %v682
        %v711 = vsel %vm696, %v680, %v681
        %v712 = vsel %vm696, %v695, %v680
        %v713 = vadd.f32 %v527, %v711
        %v714 = vadd.f32 %v529, %v710
        %v715 = vadd.f32 %v532, %v709
        %v716 = vadd.f32 %v534, %v708
        %v717 = vadd.f32 %v537, %v707
        %v718 = vadd.f32 %v539, %v706
        %v719 = vadd.f32 %v542, %v705
        %v720 = vadd.f32 %v544, %v704
        %v721 = vadd.f32 %v547, %v703
        %v722 = vadd.f32 %v549, %v702
        %v723 = vadd.f32 %v552, %v701
        %v724 = vadd.f32 %v554, %v700
        %v725 = vadd.f32 %v557, %v699
        %v726 = vadd.f32 %v559, %v698
        %v727 = vadd.f32 %v562, %v697
        %v728 = vadd.f32 %v564, %v712
        %s729 = scalar_lea.vmem [#allocation6], 192
        %v730 = vld [vmem:[%s729] sm:$0xf]
        %v731 = vld [vmem:[%s729 + $0x4] sm:$0xf]
        %v732 = vld [vmem:[%s729 + $0x8] sm:$0xf]
        %v733 = vld [vmem:[%s729 + $0xc] sm:$0xf]
        %v734 = vld [vmem:[%s729 + $0x10] sm:$0xf]
        %v735 = vld [vmem:[%s729 + $0x14] sm:$0xf]
        %v736 = vld [vmem:[%s729 + $0x18] sm:$0xf]
        %v737 = vld [vmem:[%s729 + $0x1c] sm:$0xf]
        %v738 = vld [vmem:[%s729 + $0x20] sm:$0xf]
        %v739 = vld [vmem:[%s729 + $0x24] sm:$0xf]
        %v740 = vld [vmem:[%s729 + $0x28] sm:$0xf]
        %v741 = vld [vmem:[%s729 + $0x2c] sm:$0xf]
        %v742 = vld [vmem:[%s729 + $0x30] sm:$0xf]
        %v743 = vld [vmem:[%s729 + $0x34] sm:$0xf]
        %v744 = vld [vmem:[%s729 + $0x38] sm:$0xf]
        %v745 = vld [vmem:[%s729 + $0x3c] sm:$0xf]
        %v762 = vunpack.c.l.b16 %v730
        %v763 = vunpack.c.l.b16 %v731
        %v764 = vunpack.c.l.b16 %v732
        %v765 = vunpack.c.l.b16 %v733
        %v766 = vunpack.c.l.b16 %v734
        %v767 = vunpack.c.l.b16 %v735
        %v768 = vunpack.c.l.b16 %v736
        %v769 = vunpack.c.l.b16 %v737
        %v770 = vunpack.c.l.b16 %v738
        %v771 = vunpack.c.l.b16 %v739
        %v772 = vunpack.c.l.b16 %v740
        %v773 = vunpack.c.l.b16 %v741
        %v774 = vunpack.c.l.b16 %v742
        %v775 = vunpack.c.l.b16 %v743
        %v776 = vunpack.c.l.b16 %v744
        %v777 = vunpack.c.l.b16 %v745
        %v778 = vpack.c.b16 %v763, %v762
        %v779 = vpack.c.b16 %v765, %v764
        %v780 = vpack.c.b16 %v767, %v766
        %v781 = vpack.c.b16 %v769, %v768
        %v782 = vpack.c.b16 %v771, %v770
        %v783 = vpack.c.b16 %v773, %v772
        %v784 = vpack.c.b16 %v775, %v774
        %v785 = vpack.c.b16 %v777, %v776
        %794 = vmatpush.bf16.msra.mxu0 %v785
        %795 = vmatpush.bf16.msra.mxu0 %v784
        %796 = vmatpush.bf16.msra.mxu0 %v783
        %797 = vmatpush.bf16.msra.mxu0 %v782
        %798 = vmatpush.bf16.msra.mxu0 %v781
        %799 = vmatpush.bf16.msra.mxu0 %v780
        %800 = vmatpush.bf16.msra.mxu0 %v779
        %801 = vmatpush.bf16.msra.mxu0 %v778
        %802 = vmatmul.bf16.gmra.mxu0 %v296
        %v803 = vpop.f32.mrf.mxu0
        %v804 = vadd.f32 0.0, %v803
        %v805 = vpop.f32.mrf.mxu0
        %v806 = vadd.f32 0.0, %v805
        %807 = vmatmul.bf16.gmra.mxu0 %v297
        %v808 = vpop.f32.mrf.mxu0
        %v809 = vadd.f32 0.0, %v808
        %v810 = vpop.f32.mrf.mxu0
        %v811 = vadd.f32 0.0, %v810
        %812 = vmatmul.bf16.gmra.mxu0 %v298
        %v813 = vpop.f32.mrf.mxu0
        %v814 = vadd.f32 0.0, %v813
        %v815 = vpop.f32.mrf.mxu0
        %v816 = vadd.f32 0.0, %v815
        %817 = vmatmul.bf16.gmra.mxu0 %v299
        %v818 = vpop.f32.mrf.mxu0
        %v819 = vadd.f32 0.0, %v818
        %v820 = vpop.f32.mrf.mxu0
        %v821 = vadd.f32 0.0, %v820
        %822 = vmatmul.bf16.gmra.mxu0 %v300
        %v823 = vpop.f32.mrf.mxu0
        %v824 = vadd.f32 0.0, %v823
        %v825 = vpop.f32.mrf.mxu0
        %v826 = vadd.f32 0.0, %v825
        %827 = vmatmul.bf16.gmra.mxu0 %v301
        %v828 = vpop.f32.mrf.mxu0
        %v829 = vadd.f32 0.0, %v828
        %v830 = vpop.f32.mrf.mxu0
        %v831 = vadd.f32 0.0, %v830
        %832 = vmatmul.bf16.gmra.mxu0 %v302
        %v833 = vpop.f32.mrf.mxu0
        %v834 = vadd.f32 0.0, %v833
        %v835 = vpop.f32.mrf.mxu0
        %v836 = vadd.f32 0.0, %v835
        %837 = vmatmul.bf16.gmra.mxu0 %v303
        %v838 = vpop.f32.mrf.mxu0
        %v839 = vadd.f32 0.0, %v838
        %v840 = vpop.f32.mrf.mxu0
        %v841 = vadd.f32 0.0, %v840
        %842 = vdwg.mxu0
        %v843 = vrot.slane %v804, 3
        %v844 = vrot.slane %v806, 3
        %v845 = vrot.slane %v809, 3
        %v846 = vrot.slane %v811, 3
        %v847 = vrot.slane %v814, 3
        %v848 = vrot.slane %v816, 3
        %v849 = vrot.slane %v819, 3
        %v850 = vrot.slane %v821, 3
        %v851 = vrot.slane %v824, 3
        %v852 = vrot.slane %v826, 3
        %v853 = vrot.slane %v829, 3
        %v854 = vrot.slane %v831, 3
        %v855 = vrot.slane %v834, 3
        %v856 = vrot.slane %v836, 3
        %v857 = vrot.slane %v839, 3
        %v858 = vrot.slane %v841, 3
        %vm859 = vcmp.lt.s32.totalorder %v451, 5
        %v860 = vsel %vm859, %v857, %v858
        %v861 = vsel %vm859, %v856, %v857
        %v862 = vsel %vm859, %v855, %v856
        %v863 = vsel %vm859, %v854, %v855
        %v864 = vsel %vm859, %v853, %v854
        %v865 = vsel %vm859, %v852, %v853
        %v866 = vsel %vm859, %v851, %v852
        %v867 = vsel %vm859, %v850, %v851
        %v868 = vsel %vm859, %v849, %v850
        %v869 = vsel %vm859, %v848, %v849
        %v870 = vsel %vm859, %v847, %v848
        %v871 = vsel %vm859, %v846, %v847
        %v872 = vsel %vm859, %v845, %v846
        %v873 = vsel %vm859, %v844, %v845
        %v874 = vsel %vm859, %v843, %v844
        %v875 = vsel %vm859, %v858, %v843
        %v876 = vadd.f32 %v713, %v874
        %v877 = vadd.f32 %v714, %v873
        %v878 = vadd.f32 %v715, %v872
        %v879 = vadd.f32 %v716, %v871
        %v880 = vadd.f32 %v717, %v870
        %v881 = vadd.f32 %v718, %v869
        %v882 = vadd.f32 %v719, %v868
        %v883 = vadd.f32 %v720, %v867
        %v884 = vadd.f32 %v721, %v866
        %v885 = vadd.f32 %v722, %v865
        %v886 = vadd.f32 %v723, %v864
        %v887 = vadd.f32 %v724, %v863
        %v888 = vadd.f32 %v725, %v862
        %v889 = vadd.f32 %v726, %v861
        %v890 = vadd.f32 %v727, %v860
        %v891 = vadd.f32 %v728, %v875
        %s892 = scalar_lea.vmem [#allocation6], 256
        %v893 = vld [vmem:[%s892] sm:$0xf]
        %v894 = vld [vmem:[%s892 + $0x4] sm:$0xf]
        %v895 = vld [vmem:[%s892 + $0x8] sm:$0xf]
        %v896 = vld [vmem:[%s892 + $0xc] sm:$0xf]
        %v897 = vld [vmem:[%s892 + $0x10] sm:$0xf]
        %v898 = vld [vmem:[%s892 + $0x14] sm:$0xf]
        %v899 = vld [vmem:[%s892 + $0x18] sm:$0xf]
        %v900 = vld [vmem:[%s892 + $0x1c] sm:$0xf]
        %v901 = vld [vmem:[%s892 + $0x20] sm:$0xf]
        %v902 = vld [vmem:[%s892 + $0x24] sm:$0xf]
        %v903 = vld [vmem:[%s892 + $0x28] sm:$0xf]
        %v904 = vld [vmem:[%s892 + $0x2c] sm:$0xf]
        %v905 = vld [vmem:[%s892 + $0x30] sm:$0xf]
        %v906 = vld [vmem:[%s892 + $0x34] sm:$0xf]
        %v907 = vld [vmem:[%s892 + $0x38] sm:$0xf]
        %v908 = vld [vmem:[%s892 + $0x3c] sm:$0xf]
        %v925 = vunpack.c.l.b16 %v893
        %v926 = vunpack.c.l.b16 %v894
        %v927 = vunpack.c.l.b16 %v895
        %v928 = vunpack.c.l.b16 %v896
        %v929 = vunpack.c.l.b16 %v897
        %v930 = vunpack.c.l.b16 %v898
        %v931 = vunpack.c.l.b16 %v899
        %v932 = vunpack.c.l.b16 %v900
        %v933 = vunpack.c.l.b16 %v901
        %v934 = vunpack.c.l.b16 %v902
        %v935 = vunpack.c.l.b16 %v903
        %v936 = vunpack.c.l.b16 %v904
        %v937 = vunpack.c.l.b16 %v905
        %v938 = vunpack.c.l.b16 %v906
        %v939 = vunpack.c.l.b16 %v907
        %v940 = vunpack.c.l.b16 %v908
        %v941 = vpack.c.b16 %v926, %v925
        %v942 = vpack.c.b16 %v928, %v927
        %v943 = vpack.c.b16 %v930, %v929
        %v944 = vpack.c.b16 %v932, %v931
        %v945 = vpack.c.b16 %v934, %v933
        %v946 = vpack.c.b16 %v936, %v935
        %v947 = vpack.c.b16 %v938, %v937
        %v948 = vpack.c.b16 %v940, %v939
        %957 = vmatpush.bf16.msra.mxu0 %v948
        %958 = vmatpush.bf16.msra.mxu0 %v947
        %959 = vmatpush.bf16.msra.mxu0 %v946
        %960 = vmatpush.bf16.msra.mxu0 %v945
        %961 = vmatpush.bf16.msra.mxu0 %v944
        %962 = vmatpush.bf16.msra.mxu0 %v943
        %963 = vmatpush.bf16.msra.mxu0 %v942
        %964 = vmatpush.bf16.msra.mxu0 %v941
        %965 = vmatmul.bf16.gmra.mxu0 %v296
        %v966 = vpop.f32.mrf.mxu0
        %v967 = vadd.f32 0.0, %v966
        %v968 = vpop.f32.mrf.mxu0
        %v969 = vadd.f32 0.0, %v968
        %970 = vmatmul.bf16.gmra.mxu0 %v297
        %v971 = vpop.f32.mrf.mxu0
        %v972 = vadd.f32 0.0, %v971
        %v973 = vpop.f32.mrf.mxu0
        %v974 = vadd.f32 0.0, %v973
        %975 = vmatmul.bf16.gmra.mxu0 %v298
        %v976 = vpop.f32.mrf.mxu0
        %v977 = vadd.f32 0.0, %v976
        %v978 = vpop.f32.mrf.mxu0
        %v979 = vadd.f32 0.0, %v978
        %980 = vmatmul.bf16.gmra.mxu0 %v299
        %v981 = vpop.f32.mrf.mxu0
        %v982 = vadd.f32 0.0, %v981
        %v983 = vpop.f32.mrf.mxu0
        %v984 = vadd.f32 0.0, %v983
        %985 = vmatmul.bf16.gmra.mxu0 %v300
        %v986 = vpop.f32.mrf.mxu0
        %v987 = vadd.f32 0.0, %v986
        %v988 = vpop.f32.mrf.mxu0
        %v989 = vadd.f32 0.0, %v988
        %990 = vmatmul.bf16.gmra.mxu0 %v301
        %v991 = vpop.f32.mrf.mxu0
        %v992 = vadd.f32 0.0, %v991
        %v993 = vpop.f32.mrf.mxu0
        %v994 = vadd.f32 0.0, %v993
        %995 = vmatmul.bf16.gmra.mxu0 %v302
        %v996 = vpop.f32.mrf.mxu0
        %v997 = vadd.f32 0.0, %v996
        %v998 = vpop.f32.mrf.mxu0
        %v999 = vadd.f32 0.0, %v998
        %1000 = vmatmul.bf16.gmra.mxu0 %v303
        %v1001 = vpop.f32.mrf.mxu0
        %v1002 = vadd.f32 0.0, %v1001
        %v1003 = vpop.f32.mrf.mxu0
        %v1004 = vadd.f32 0.0, %v1003
        %1005 = vdwg.mxu0
        %v1006 = vrot.slane %v967, 4
        %v1007 = vrot.slane %v969, 4
        %v1008 = vrot.slane %v972, 4
        %v1009 = vrot.slane %v974, 4
        %v1010 = vrot.slane %v977, 4
        %v1011 = vrot.slane %v979, 4
        %v1012 = vrot.slane %v982, 4
        %v1013 = vrot.slane %v984, 4
        %v1014 = vrot.slane %v987, 4
        %v1015 = vrot.slane %v989, 4
        %v1016 = vrot.slane %v992, 4
        %v1017 = vrot.slane %v994, 4
        %v1018 = vrot.slane %v997, 4
        %v1019 = vrot.slane %v999, 4
        %v1020 = vrot.slane %v1002, 4
        %v1021 = vrot.slane %v1004, 4
        %vm1022 = vcmp.lt.s32.totalorder %v451, 4
        %v1023 = vsel %vm1022, %v1020, %v1021
        %v1024 = vsel %vm1022, %v1019, %v1020
        %v1025 = vsel %vm1022, %v1018, %v1019
        %v1026 = vsel %vm1022, %v1017, %v1018
        %v1027 = vsel %vm1022, %v1016, %v1017
        %v1028 = vsel %vm1022, %v1015, %v1016
        %v1029 = vsel %vm1022, %v1014, %v1015
        %v1030 = vsel %vm1022, %v1013, %v1014
        %v1031 = vsel %vm1022, %v1012, %v1013
        %v1032 = vsel %vm1022, %v1011, %v1012
        %v1033 = vsel %vm1022, %v1010, %v1011
        %v1034 = vsel %vm1022, %v1009, %v1010
        %v1035 = vsel %vm1022, %v1008, %v1009
        %v1036 = vsel %vm1022, %v1007, %v1008
        %v1037 = vsel %vm1022, %v1006, %v1007
        %v1038 = vsel %vm1022, %v1021, %v1006
        %v1039 = vadd.f32 %v876, %v1037
        %v1040 = vadd.f32 %v877, %v1036
        %v1041 = vadd.f32 %v878, %v1035
        %v1042 = vadd.f32 %v879, %v1034
        %v1043 = vadd.f32 %v880, %v1033
        %v1044 = vadd.f32 %v881, %v1032
        %v1045 = vadd.f32 %v882, %v1031
        %v1046 = vadd.f32 %v883, %v1030
        %v1047 = vadd.f32 %v884, %v1029
        %v1048 = vadd.f32 %v885, %v1028
        %v1049 = vadd.f32 %v886, %v1027
        %v1050 = vadd.f32 %v887, %v1026
        %v1051 = vadd.f32 %v888, %v1025
        %v1052 = vadd.f32 %v889, %v1024
        %v1053 = vadd.f32 %v890, %v1023
        %v1054 = vadd.f32 %v891, %v1038
        %v1055 = vld [vmem:[%s3] sm:$0x1]
        %v1057 = vperm.slane %v1055, 0
        %v1059 = vadd.f32 %v1039, %v1057
        %v1060 = vadd.f32 %v1040, %v1057
        %v1061 = vadd.f32 %v1041, %v1057
        %v1062 = vadd.f32 %v1042, %v1057
        %v1063 = vadd.f32 %v1043, %v1057
        %v1064 = vadd.f32 %v1044, %v1057
        %v1065 = vadd.f32 %v1045, %v1057
        %v1066 = vadd.f32 %v1046, %v1057
        %v1067 = vadd.f32 %v1047, %v1057
        %v1068 = vadd.f32 %v1048, %v1057
        %v1069 = vadd.f32 %v1049, %v1057
        %v1070 = vadd.f32 %v1050, %v1057
        %v1071 = vadd.f32 %v1051, %v1057
        %v1072 = vadd.f32 %v1052, %v1057
        %v1073 = vadd.f32 %v1053, %v1057
        %v1074 = vadd.f32 %v1054, %v1057
        %v1075 = vtanh.pop %v1059
        %v1076 = vtanh.pop %v1060
        %v1077 = vtanh.pop %v1061
        %v1078 = vtanh.pop %v1062
        %v1079 = vtanh.pop %v1063
        %v1080 = vtanh.pop %v1064
        %v1081 = vtanh.pop %v1065
        %v1082 = vtanh.pop %v1066
        %v1083 = vtanh.pop %v1067
        %v1084 = vtanh.pop %v1068
        %v1085 = vtanh.pop %v1069
        %v1086 = vtanh.pop %v1070
        %v1087 = vtanh.pop %v1071
        %v1088 = vtanh.pop %v1072
        %v1089 = vtanh.pop %v1073
        %v1090 = vtanh.pop %v1074
        %v1091 = vld [vmem:[%s4] sm:$0xff]
        %v1092 = vld [vmem:[%s4 + $0x8] sm:$0xff]
        %v1093 = vadd.f32 %v1075, %v1091
        %v1094 = vadd.f32 %v1076, %v1092
        %v1095 = vadd.f32 %v1077, %v1091
        %v1096 = vadd.f32 %v1078, %v1092
        %v1097 = vadd.f32 %v1079, %v1091
        %v1098 = vadd.f32 %v1080, %v1092
        %v1099 = vadd.f32 %v1081, %v1091
        %v1100 = vadd.f32 %v1082, %v1092
        %v1101 = vadd.f32 %v1083, %v1091
        %v1102 = vadd.f32 %v1084, %v1092
        %v1103 = vadd.f32 %v1085, %v1091
        %v1104 = vadd.f32 %v1086, %v1092
        %v1105 = vadd.f32 %v1087, %v1091
        %v1106 = vadd.f32 %v1088, %v1092
        %v1107 = vadd.f32 %v1089, %v1091
        %v1108 = vadd.f32 %v1090, %v1092
        %v1109 = vmax.f32 %v1093, %v1094
        %v1110 = vrot.slane %v1109, 4
        %v1111 = vmax.f32 %v1109, %v1110
        %v1112 = vrot.slane %v1111, 2
        %v1113 = vmax.f32 %v1111, %v1112
        %v1114 = vrot.slane %v1113, 1
        %v1115 = vmax.f32 %v1113, %v1114
        %v1116 = vmax.f32 %v1095, %v1096
        %v1117 = vrot.slane %v1116, 4
        %v1118 = vmax.f32 %v1116, %v1117
        %v1119 = vrot.slane %v1118, 2
        %v1120 = vmax.f32 %v1118, %v1119
        %v1121 = vrot.slane %v1120, 1
        %v1122 = vmax.f32 %v1120, %v1121
        %v1123 = vmax.f32 %v1097, %v1098
        %v1124 = vrot.slane %v1123, 4
        %v1125 = vmax.f32 %v1123, %v1124
        %v1126 = vrot.slane %v1125, 2
        %v1127 = vmax.f32 %v1125, %v1126
        %v1128 = vrot.slane %v1127, 1
        %v1129 = vmax.f32 %v1127, %v1128
        %v1130 = vmax.f32 %v1099, %v1100
        %v1131 = vrot.slane %v1130, 4
        %v1132 = vmax.f32 %v1130, %v1131
        %v1133 = vrot.slane %v1132, 2
        %v1134 = vmax.f32 %v1132, %v1133
        %v1135 = vrot.slane %v1134, 1
        %v1136 = vmax.f32 %v1134, %v1135
        %v1137 = vmax.f32 %v1101, %v1102
        %v1138 = vrot.slane %v1137, 4
        %v1139 = vmax.f32 %v1137, %v1138
        %v1140 = vrot.slane %v1139, 2
        %v1141 = vmax.f32 %v1139, %v1140
        %v1142 = vrot.slane %v1141, 1
        %v1143 = vmax.f32 %v1141, %v1142
        %v1144 = vmax.f32 %v1103, %v1104
        %v1145 = vrot.slane %v1144, 4
        %v1146 = vmax.f32 %v1144, %v1145
        %v1147 = vrot.slane %v1146, 2
        %v1148 = vmax.f32 %v1146, %v1147
        %v1149 = vrot.slane %v1148, 1
        %v1150 = vmax.f32 %v1148, %v1149
        %v1151 = vmax.f32 %v1105, %v1106
        %v1152 = vrot.slane %v1151, 4
        %v1153 = vmax.f32 %v1151, %v1152
        %v1154 = vrot.slane %v1153, 2
        %v1155 = vmax.f32 %v1153, %v1154
        %v1156 = vrot.slane %v1155, 1
        %v1157 = vmax.f32 %v1155, %v1156
        %v1158 = vmax.f32 %v1107, %v1108
        %v1159 = vrot.slane %v1158, 4
        %v1160 = vmax.f32 %v1158, %v1159
        %v1161 = vrot.slane %v1160, 2
        %v1162 = vmax.f32 %v1160, %v1161
        %v1163 = vrot.slane %v1162, 1
        %v1164 = vmax.f32 %v1162, %v1163
        %v1165 = vpack.c.bf16 %v1115, %v1115
        %v1166 = vpack.c.bf16 %v1122, %v1122
        %v1167 = vpack.c.bf16 %v1129, %v1129
        %v1168 = vpack.c.bf16 %v1136, %v1136
        %v1169 = vpack.c.bf16 %v1143, %v1143
        %v1170 = vpack.c.bf16 %v1150, %v1150
        %v1171 = vpack.c.bf16 %v1157, %v1157
        %v1172 = vpack.c.bf16 %v1164, %v1164
        %v1173 = vld [vmem:[#allocation9] sm:$0xf]
        %v1174 = vld [vmem:[#allocation9 + $0x4] sm:$0xf]
        %v1175 = vld [vmem:[#allocation9 + $0x8] sm:$0xf]
        %v1176 = vld [vmem:[#allocation9 + $0xc] sm:$0xf]
        %v1177 = vld [vmem:[#allocation9 + $0x10] sm:$0xf]
        %v1178 = vld [vmem:[#allocation9 + $0x14] sm:$0xf]
        %v1179 = vld [vmem:[#allocation9 + $0x18] sm:$0xf]
        %v1180 = vld [vmem:[#allocation9 + $0x1c] sm:$0xf]
        %v1181 = vld [vmem:[#allocation9 + $0x20] sm:$0xf]
        %v1182 = vld [vmem:[#allocation9 + $0x24] sm:$0xf]
        %v1183 = vld [vmem:[#allocation9 + $0x28] sm:$0xf]
        %v1184 = vld [vmem:[#allocation9 + $0x2c] sm:$0xf]
        %v1185 = vld [vmem:[#allocation9 + $0x30] sm:$0xf]
        %v1186 = vld [vmem:[#allocation9 + $0x34] sm:$0xf]
        %v1187 = vld [vmem:[#allocation9 + $0x38] sm:$0xf]
        %v1188 = vld [vmem:[#allocation9 + $0x3c] sm:$0xf]
        %v1189 = vld [vmem:[%s6] sm:$0x1]
        %v1191 = vperm.slane %v1189, 0
        %v1201 = vunpack.c.l.b16 %v1165
        %v1202 = vunpack.c.l.b16 %v1166
        %v1203 = vunpack.c.l.b16 %v1167
        %v1204 = vunpack.c.l.b16 %v1168
        %v1205 = vunpack.c.l.b16 %v1169
        %v1206 = vunpack.c.l.b16 %v1170
        %v1207 = vunpack.c.l.b16 %v1171
        %v1208 = vunpack.c.l.b16 %v1172
        %vm1209 = vcmask 1041409
        %v1210 = vsel %vm1209, %v1202, %v1201
        %vm1211 = vcmask 1042434
        %v1212 = vsel %vm1211, %v1203, %v1210
        %vm1213 = vcmask 1043459
        %v1214 = vsel %vm1213, %v1204, %v1212
        %vm1215 = vcmask 1044484
        %v1216 = vsel %vm1215, %v1205, %v1214
        %vm1217 = vcmask 1045509
        %v1218 = vsel %vm1217, %v1206, %v1216
        %vm1219 = vcmask 1046534
        %v1220 = vsel %vm1219, %v1207, %v1218
        %vm1221 = vcmask 1047559
        %v1222 = vsel %vm1221, %v1208, %v1220
        %v1223 = vpack.c.b16 %v1222, %v1222
        %v1241 = vunpack.c.l.b16 %v1173
        %v1242 = vunpack.c.l.b16 %v1174
        %v1243 = vunpack.c.l.b16 %v1175
        %v1244 = vunpack.c.l.b16 %v1176
        %v1245 = vunpack.c.l.b16 %v1177
        %v1246 = vunpack.c.l.b16 %v1178
        %v1247 = vunpack.c.l.b16 %v1179
        %v1248 = vunpack.c.l.b16 %v1180
        %v1249 = vunpack.c.l.b16 %v1181
        %v1250 = vunpack.c.l.b16 %v1182
        %v1251 = vunpack.c.l.b16 %v1183
        %v1252 = vunpack.c.l.b16 %v1184
        %v1253 = vunpack.c.l.b16 %v1185
        %v1254 = vunpack.c.l.b16 %v1186
        %v1255 = vunpack.c.l.b16 %v1187
        %v1256 = vunpack.c.l.b16 %v1188
        %v1257 = vpack.c.b16 %v1242, %v1241
        %v1258 = vpack.c.b16 %v1244, %v1243
        %v1259 = vpack.c.b16 %v1246, %v1245
        %v1260 = vpack.c.b16 %v1248, %v1247
        %v1261 = vpack.c.b16 %v1250, %v1249
        %v1262 = vpack.c.b16 %v1252, %v1251
        %v1263 = vpack.c.b16 %v1254, %v1253
        %v1264 = vpack.c.b16 %v1256, %v1255
        %1273 = vmatpush.bf16.msra.mxu0 %v1264
        %1274 = vmatpush.bf16.msra.mxu0 %v1263
        %1275 = vmatpush.bf16.msra.mxu0 %v1262
        %1276 = vmatpush.bf16.msra.mxu0 %v1261
        %1277 = vmatpush.bf16.msra.mxu0 %v1260
        %1278 = vmatpush.bf16.msra.mxu0 %v1259
        %1279 = vmatpush.bf16.msra.mxu0 %v1258
        %1280 = vmatpush.bf16.msra.mxu0 %v1257
        %1281 = vmatmul.bf16.gmra.mxu0 %v1223
        %v1282 = vpop.f32.mrf.mxu0
        %v1283 = vadd.f32 %v1191, %v1282
        %v1284 = vpop.f32.mrf.mxu0
        %1285 = vdwg.mxu0
        %v1286 = vxor.u32 %v1283, 2147483648
        %v1287 = vmul.f32 %v1286, 1.442695
        %v1288 = vpow.pop %v1287
        %v1289 = vadd.f32 %v1288, 1.0
        %v1290 = vrcp.pop %v1289
        %v1291 = vmul.f32 %v1289, %v1290
        %v1292 = vsub.f32 1.0, %v1291
        %v1293 = vmul.f32 %v1290, %v1292
        %v1294 = vadd.f32 %v1290, %v1293
        %vm1295 = vweird.f32 %v1289
        %vm1296 = vweird.f32 %v1290
        %vm1297 = vmor %vm1295, %vm1296
        %v1298 = vsel %vm1297, %v1290, %v1294
        %v1299 = vand.u32 2147483647, %v1289
        %vm1300 = vcmp.eq.f32.partialorder %v1299, 8.507059e+37
        %v1301 = vand.u32 %v1289, 2147483648
        %v1302 = vor.u32 1.1754944e-38, %v1301
        %v1303 = vsel %vm1300, %v1302, %v1298
        %v1304 = vmul.f32 1.0, %v1303
        %1305 = vst [vmem:[%s246] sm:$0xff] %v1304
        %s1306 = sand.u32 %s144, 1
        %s1307 = scalar_lea.sflag [#allocation8], %s1306
        %s1308 = sand.u32 %s144, 1
        %s1309 = smul.addr %s1308, 8
        %s1310 = scalar_lea.vmem [#allocation11], %s1309
        // Predicated region
        $region67: #{cnn_forward.1} parent=39 // pred_check
          %p1311 = pneg %p154
        $region68: #{cnn_forward.1} parent=39 // pred_check_branch
          %1313 = sbr.rel (%p1311) target = $region70
        $region69: #{cnn_forward.1} parent=39 // pred_region
          %1315 = vsyncadd %s1307, 0
          %s1316 = smul.addr %s31, 8
          %s1317 = scalar_lea.hbm %s7, %s1316
          %s1319 = sshll.u32 %s1310, 4
          %s1320 = int_to_ptr.vmem [resolvable:$true] %s1319
          %s1321 = sshll.u32 %s1317, 4
          %s1322 = int_to_ptr.hbm [resolvable:$true] %s1321
          %1324 = dma.vmem_to_hbm [thread:$0]  %s1320, 128, %s1322, %s1307
        $region70: #{cnn_forward.1} parent=39 // pred_fallthru
          _
      $region40: #{cnn_forward.1} parent=5 // pred_fallthru
        _
      %p1325 = scmp.le.s32.totalorder 2, %s26
      // Predicated region
      $region71: #{cnn_forward.1} parent=5 // pred_check
        %p1326 = pneg %p1325
      $region72: #{cnn_forward.1} parent=5 // pred_check_branch
        %1328 = sbr.rel (%p1326) target = $region74
      $region73: #{cnn_forward.1} parent=5 // pred_region
        %s1329 = ssub.s32 %s26, 2
        // Predicated region
        $region75: #{cnn_forward.1} parent=73 // pred_check
          %p1330 = pneg %p160
        $region76: #{cnn_forward.1} parent=73 // pred_check_branch
          %1332 = sbr.rel (%p1330) target = $region78
        $region77: #{cnn_forward.1} parent=73 // pred_region
          %s1333 = sand.u32 %s145, 1
          %s1334 = scalar_lea.sflag [#allocation8], %s1333
          %s1335 = sand.u32 %s145, 1
          %s1336 = smul.addr %s1335, 8
          %s1337 = scalar_lea.vmem [#allocation11], %s1336
          %1339 = dma.done %s1334, 128
        $region78: #{cnn_forward.1} parent=73 // pred_fallthru
          _
      $region74: #{cnn_forward.1} parent=5 // pred_fallthru
        _
    $region6: #{cnn_forward.1} parent=1 // loop_footer
      %s30 = sadd.s32 1, %s26
    $region7: #{cnn_forward.1} parent=1 // loop_footer_branch
      %25 = sbr.rel target = $region3
    $region8: #{cnn_forward.1} parent=1 // loop_exit
      _
    %1340 = vsyncpa [#allocation7], 1
    %s1341 = scalar_lea.sflag [#allocation7], 1
    %1342 = vsyncpa %s1341, 1
    %1343 = vsyncpa [#allocation10], 1
    %1344 = vsyncpa [#allocation8], 1
    %s1345 = scalar_lea.sflag [#allocation8], 1
    %1346 = vsyncpa %s1345, 1
  %1347 = vsyncmov [#allocation3]
  %s1348 = vpop.sfrf %1347
  %p1349 = scmp.eq.s32.totalorder %s1348, 0
  %p1350 = pneg %p1349
  %1352 = shalt.err (%p1350)

</llo_original>
